<compile_context>
chip_gen: v6e
topology: v6e:2x2x1
jax: 0.10.0
libtpu: 0.0.40
codegen_flags: <defaults>
</compile_context>

<pallas_src>
import functools

import jax
import jax.numpy as jnp
import numpy as np
from jax.experimental import pallas as pl
from jax.experimental.pallas import tpu as pltpu


# ----------------------------------------------------------------------------
# elementwise helpers (shared by kernel and reference)
# ----------------------------------------------------------------------------
def _gelu(x):
    # tanh-approximate GELU (== torch gelu(approximate='tanh')); tanh -> EUP.
    c = 0.7978845608028654  # sqrt(2/pi)
    return 0.5 * x * (1.0 + jnp.tanh(c * (x + 0.044715 * x * x * x)))


def _sigmoid(x):
    return 1.0 / (1.0 + jnp.exp(-x))


def _rmsnorm(x, gamma, dim):
    # PyTorch module: (x / ||x||_2) * gamma * sqrt(dim); eps guards zero rows.
    inv = jax.lax.rsqrt(jnp.sum(x * x, axis=-1, keepdims=True) + 1e-12)
    return x * inv * (gamma * (dim ** 0.5))


# ----------------------------------------------------------------------------
# Pallas kernel: one (bb, Lc, d) chunk of the SEaHawkBlock forward
# ----------------------------------------------------------------------------
def seahawk_kernel(
    x_ref,
    g1s_ref, inpW_ref, convW_ref, convb_ref,
    fusedW_ref, fusedb_ref,
    aterm_ref, outW_ref,
    g2s_ref, growW_ref, shrinkW_ref,
    o_ref,
    h_ref,        # VMEM scratch (bb, n, d)   -- recurrence state, carried over L chunks
    halo_ref,     # VMEM scratch (bb, K-1, d) -- causal-conv halo, carried over L chunks
    *, bb, Lc, d, n, K, hidden,
):
    lc = pl.program_id(1)

    # carried state is (re-)initialized at the first L-chunk of every batch block
    @pl.when(lc == 0)
    def _():
        h_ref[...] = jnp.zeros_like(h_ref)
        halo_ref[...] = jnp.zeros_like(halo_ref)

    Mc = bb * Lc
    x = x_ref[...].reshape(Mc, d).astype(jnp.float32)            # (Mc, d)

    def mm(a, w_ref):
        # matmul operands in the (possibly bf16) weight dtype, f32 accumulate
        return jnp.dot(a.astype(w_ref.dtype), w_ref[...],
                       preferred_element_type=jnp.float32)

    # ---- hawk_norm (RMSNorm; gamma*sqrt(d) pre-folded into g1s) ----
    xn = x * jax.lax.rsqrt(jnp.sum(x * x, axis=-1, keepdims=True) + 1e-12)
    xn = xn * g1s_ref[...]                                       # (Mc, d)

    # ---- SELRU input projection ----
    proj = mm(xn, inpW_ref)                                      # (Mc, 2d)
    skip = proj[:, :d]
    xc = proj[:, d:]

    # ---- causal depthwise conv1d (kernel K), K-1 row halo carried across chunks ----
    xc3 = xc.reshape(bb, Lc, d)
    padded = jnp.concatenate([halo_ref[...], xc3], axis=1)       # (bb, Lc+K-1, d)
    conv3 = jnp.zeros((bb, Lc, d), jnp.float32)
    for k in range(K):                                           # K static slices
        w_k = convW_ref[k:k + 1, :].reshape(1, 1, d)
        conv3 = conv3 + w_k * padded[:, k:k + Lc, :]
    halo_ref[...] = xc3[:, Lc - (K - 1):, :]                     # halo for next chunk
    conv = conv3.reshape(Mc, d) + convb_ref[...]                 # (Mc, d)

    # ---- fused W_bc / W_lambda projection: one lane-denser matmul ----
    bcl = mm(conv, fusedW_ref) + fusedb_ref[...]                 # (Mc, 2n + d)
    b_g = bcl[:, :n]
    c_g = bcl[:, n:2 * n]
    sig = _sigmoid(bcl[:, 2 * n:])                               # (Mc, d)

    # ---- recurrence: chunk-vectorized lam / bu precompute, serial FMA loop ----
    a_term = aterm_ref[...]                                      # (n, d), precomputed
    lam = jnp.exp(sig.reshape(bb, Lc, 1, d) * a_term[None, None, :, :])    # (bb,Lc,n,d)
    bu = b_g.reshape(bb, Lc, n, 1) * conv.reshape(bb, Lc, 1, d)            # (bb,Lc,n,d)
    bu = jnp.sqrt(1.0 - lam * lam + 1e-6) * bu
    c4 = c_g.reshape(bb, Lc, n, 1)

    h = h_ref[...]                                               # (bb, n, d)
    outs = []
    for t in range(Lc):                  # short static unroll (Lc <= 16 per chunk)
        h = lam[:, t] * h + bu[:, t]
        outs.append(jnp.sum(c4[:, t] * h, axis=1))               # (bb, d) sublane reduce
    h_ref[...] = h                                               # carry to next chunk
    xh = jnp.stack(outs, axis=1).reshape(Mc, d)                  # (Mc, d) chunk slab

    # ---- SELRU output + residual (dropout = identity) ----
    hawk = mm(_gelu(skip) * xh, outW_ref)                        # (Mc, d)
    x1 = x + hawk

    # ---- hawk_gmlp_norm (RMSNorm) + GatedMLP + residual ----
    xn2 = x1 * jax.lax.rsqrt(jnp.sum(x1 * x1, axis=-1, keepdims=True) + 1e-12)
    xn2 = xn2 * g2s_ref[...]
    g = mm(xn2, growW_ref)                                       # (Mc, 2*hidden)
    mact = _gelu(g[:, :hidden]) * g[:, hidden:]
    out2 = mm(mact, shrinkW_ref)                                 # (Mc, d)

    o_ref[...] = (x1 + out2).reshape(bb, Lc, d).astype(o_ref.dtype)


# ----------------------------------------------------------------------------
# wrapper
# ----------------------------------------------------------------------------
def seahawk_block(x, p, *, n, K, hidden, matmul_dtype=jnp.bfloat16,
                  batch_block=None, l_chunk=None):
    B, L, d = x.shape
    assert K >= 2, "kernel_size >= 2 expected (halo carry)"

    # default: >=2 grid steps along batch so both v7x TensorCores are busy;
    # ~0.35us/step grid overhead is negligible on single-TC v5e/v6e.
    if batch_block is None:
        bb = B // 2 if (B % 2 == 0 and B >= 2) else B
    else:
        bb = batch_block
    assert B % bb == 0, "batch_block must divide B"

    Lc = min(L, 16) if l_chunk is None else l_chunk
    assert L % Lc == 0, "l_chunk must divide L"
    assert Lc >= K - 1, "l_chunk must be >= kernel_size - 1 (conv halo)"
    assert Lc == L or Lc % 8 == 0, "l_chunk must be sublane-aligned (mult of 8) or == L"

    # hoist parameter-only math out of the kernel
    g1s = (p['g1'] * (d ** 0.5)).astype(jnp.float32)             # gamma*sqrt(d)
    g2s = (p['g2'] * (d ** 0.5)).astype(jnp.float32)
    a_term = (-8.0 * jax.nn.softplus(p['A'])).astype(jnp.float32)

    def cast_w(w):  # matmul operands only; elementwise math stays f32
        return w.astype(matmul_dtype)

    # fuse the two conv-fed projections into one lane-denser matmul
    fusedW = jnp.concatenate([p['wbcW'], p['wlamW']], axis=1)    # (d, 2n + d)
    fusedb = jnp.concatenate([p['wbcb'], p['wlamb']], axis=1)    # (1, 2n + d)

    weights = [g1s, cast_w(p['inpW']), p['convW'], p['convb'],
               cast_w(fusedW), fusedb,
               a_term, cast_w(p['outW']), g2s,
               cast_w(p['growW']), cast_w(p['shrinkW'])]

    kernel = functools.partial(seahawk_kernel, bb=bb, Lc=Lc, d=d, n=n, K=K,
                               hidden=hidden)

    def full_spec(a):
        nd = a.ndim
        return pl.BlockSpec(a.shape, lambda i, lc, _nd=nd: (0,) * _nd)

    in_specs = ([pl.BlockSpec((bb, Lc, d), lambda i, lc: (i, lc, 0))]
                + [full_spec(w) for w in weights])

    # --- VMEM budget (per grid step) + cost estimate ---
    itemsize = x.dtype.itemsize
    Mc = bb * Lc
    block_bytes = bb * Lc * d * itemsize
    weight_bytes = sum(int(np.prod(w.shape)) * w.dtype.itemsize for w in weights)
    scratch_bytes = 4 * (bb * n * d + bb * (K - 1) * d)
    interm_bytes = 4 * Mc * (2 * d + d + (2 * n + d) + 2 * hidden + 4 * d) \
        + 4 * 2 * bb * Lc * n * d
    est = 2 * weight_bytes + 4 * block_bytes + scratch_bytes + interm_bytes
    vmem_limit = int(min(48 * 2 ** 20, max(16 * 2 ** 20, 2 * est)))

    M = B * L
    flops = int(2 * M * d * (2 * d) + 2 * M * d * (2 * n + d) + 2 * M * d * d
                + 2 * M * d * (2 * hidden) + 2 * M * hidden * d
                + 2 * M * K * d + 8 * M * n * d)
    transcendentals = int(M * n * d + M * d + M * (d + hidden))
    bytes_accessed = int(2 * M * d * itemsize + weight_bytes)
    cost = pl.CostEstimate(flops=flops, transcendentals=transcendentals,
                           bytes_accessed=bytes_accessed)

    return pl.pallas_call(
        kernel,
        out_shape=jax.ShapeDtypeStruct((B, L, d), x.dtype),
        grid=(B // bb, L // Lc),
        in_specs=in_specs,
        out_specs=pl.BlockSpec((bb, Lc, d), lambda i, lc: (i, lc, 0)),
        scratch_shapes=[pltpu.VMEM((bb, n, d), jnp.float32),
                        pltpu.VMEM((bb, K - 1, d), jnp.float32)],
        compiler_params=pltpu.CompilerParams(
            dimension_semantics=("parallel", "arbitrary"),
            vmem_limit_bytes=vmem_limit),
        cost_estimate=cost,
    )(x, *weights)


# ----------------------------------------------------------------------------
# deterministic parameter init (mirrors module __init__ shapes / stds)
# ----------------------------------------------------------------------------
def init_forget_gate(size, a=0.001, b=0.1, lo=-9.0, hi=-4.323):
    x = jnp.log(jnp.expm1(jnp.linspace(a, b, size)))
    x = (x - x.min()) / (x.max() - x.min())
    return x * abs(hi - lo) + lo


def init_params(key, d, n, K, hidden):
    ks = jax.random.split(key, 10)
    std_d, std_n, std_h = d ** -0.5, n ** -0.5, hidden ** -0.5
    bnd = d ** -0.5            # PyTorch Linear default bias bound = 1/sqrt(fan_in)
    cbnd = (1.0 * K) ** -0.5   # Conv1d default bound (fan_in = in/groups * K)

    inpW = (jax.random.normal(ks[0], (2 * d, d)) * std_d).T                 # (d, 2d)
    convW = jax.random.uniform(ks[1], (d, K), minval=-cbnd, maxval=cbnd).T  # (K, d)
    convb = jax.random.uniform(ks[2], (1, d), minval=-cbnd, maxval=cbnd)
    wbcW = (jax.random.normal(ks[3], (2 * n, d)) * std_n).T                 # (d, 2n)
    wbcb = jax.random.uniform(ks[4], (1, 2 * n), minval=-bnd, maxval=bnd)
    wlamW = (jax.random.normal(ks[5], (d, d)) * std_d).T                    # (d, d)
    wlamb = jax.random.uniform(ks[6], (1, d), minval=-bnd, maxval=bnd)
    A = jnp.tile(init_forget_gate(d)[None, :], (n, 1))                      # (n, d)
    outW = (jax.random.normal(ks[7], (d, d)) * std_d).T                     # (d, d)
    growW = (jax.random.normal(ks[8], (2 * hidden, d)) * std_d).T           # (d, 2h)
    shrinkW = (jax.random.normal(ks[9], (d, hidden)) * std_h).T             # (h, d)

    return dict(
        g1=jnp.ones((1, d), jnp.float32), g2=jnp.ones((1, d), jnp.float32),
        inpW=inpW.astype(jnp.float32), convW=convW.astype(jnp.float32),
        convb=convb.astype(jnp.float32), wbcW=wbcW.astype(jnp.float32),
        wbcb=wbcb.astype(jnp.float32), wlamW=wlamW.astype(jnp.float32),
        wlamb=wlamb.astype(jnp.float32), A=A.astype(jnp.float32),
        outW=outW.astype(jnp.float32), growW=growW.astype(jnp.float32),
        shrinkW=shrinkW.astype(jnp.float32),
    )


# ----------------------------------------------------------------------------
# pure-JAX reference (same math, batched) for the correctness check
# ----------------------------------------------------------------------------
def seahawk_ref(x, p, *, n, K, hidden):
    B, L, d = x.shape
    xn = _rmsnorm(x, p['g1'], d)
    proj = xn @ p['inpW']
    skip, xc = proj[..., :d], proj[..., d:]
    xc_pad = jnp.concatenate([jnp.zeros((B, K - 1, d), jnp.float32), xc], axis=1)
    conv = sum(p['convW'][k] * xc_pad[:, k:k + L, :] for k in range(K)) + p['convb']
    bc = conv @ p['wbcW'] + p['wbcb']
    b_g, c_g = bc[..., :n], bc[..., n:]
    sig = _sigmoid(conv @ p['wlamW'] + p['wlamb'])
    a_term = -8.0 * jax.nn.softplus(p['A'])
    Lam = jnp.exp(sig[:, :, None, :] * a_term[None, None, :, :])
    bu = b_g[..., :, None] * conv[:, :, None, :]
    bu = jnp.sqrt(1.0 - Lam * Lam + 1e-6) * bu

    def step(h, inp):
        lam_t, bu_t = inp
        h = lam_t * h + bu_t
        return h, h

    _, hs = jax.lax.scan(step, jnp.zeros((B, n, d), jnp.float32),
                         (jnp.moveaxis(Lam, 1, 0), jnp.moveaxis(bu, 1, 0)))
    h = jnp.moveaxis(hs, 0, 1)
    xo = jnp.einsum('bln,blnd->bld', c_g, h)
    x1 = x + (_gelu(skip) * xo) @ p['outW']
    xn2 = _rmsnorm(x1, p['g2'], d)
    g = xn2 @ p['growW']
    m = _gelu(g[..., :hidden]) * g[..., hidden:]
    return x1 + m @ p['shrinkW']


if __name__ == "__main__":
    B, L, d = 2, 16, 32         # batch, seq, model dim (toy sizes)
    n, K, expansion = 8, 4, 2   # state_dim, kernel_size, gmlp_expansion
    hidden = d * expansion

    root = jax.random.PRNGKey(0)
    kp, kx = jax.random.split(root)
    params = init_params(kp, d, n, K, hidden)
    x = jax.random.normal(kx, (B, L, d), jnp.float32)

    ref = seahawk_ref(x, params, n=n, K=K, hidden=hidden)

    # f32-operand path, single L chunk per batch block: tight check
    out = seahawk_block(x, params, n=n, K=K, hidden=hidden,
                        matmul_dtype=jnp.float32)
    out = jax.block_until_ready(out)
    assert out.shape == (B, L, d)
    err = float(np.max(np.abs(np.asarray(out) - np.asarray(ref))))
    assert np.allclose(np.asarray(out), np.asarray(ref), rtol=1e-3, atol=1e-3), (
        "f32 path max abs diff = %g" % err)

    # f32 path with two L chunks: exercises the carried h state + conv halo
    out_c = seahawk_block(x, params, n=n, K=K, hidden=hidden,
                          matmul_dtype=jnp.float32, l_chunk=8)
    out_c = jax.block_until_ready(out_c)
    err_c = float(np.max(np.abs(np.asarray(out_c) - np.asarray(ref))))
    assert np.allclose(np.asarray(out_c), np.asarray(ref), rtol=1e-3, atol=1e-3), (
        "chunked path max abs diff = %g" % err_c)

    # bf16 matmul-operand path (full MXU rate on v5e/v6e/v7x), f32 accumulation
    out_bf = seahawk_block(x, params, n=n, K=K, hidden=hidden,
                           matmul_dtype=jnp.bfloat16)
    out_bf = jax.block_until_ready(out_bf)
    err_bf = float(np.max(np.abs(np.asarray(out_bf) - np.asarray(ref))))
    assert np.allclose(np.asarray(out_bf), np.asarray(ref), rtol=5e-2, atol=5e-2), (
        "bf16 path max abs diff = %g" % err_bf)

    print("KERNEL_OK")
</pallas_src>

<mosaic_0001>
module attributes {stable_mosaic.version = 11 : i64} {
  func.func @seahawk_kernel(%arg0: i32, %arg1: i32, %arg2: memref<1x16x32xf32, #tpu.memory_space<vmem>>, %arg3: memref<1x32xf32, #tpu.memory_space<vmem>>, %arg4: memref<32x64xf32, #tpu.memory_space<vmem>>, %arg5: memref<4x32xf32, #tpu.memory_space<vmem>>, %arg6: memref<1x32xf32, #tpu.memory_space<vmem>>, %arg7: memref<32x48xf32, #tpu.memory_space<vmem>>, %arg8: memref<1x48xf32, #tpu.memory_space<vmem>>, %arg9: memref<8x32xf32, #tpu.memory_space<vmem>>, %arg10: memref<32x32xf32, #tpu.memory_space<vmem>>, %arg11: memref<1x32xf32, #tpu.memory_space<vmem>>, %arg12: memref<32x128xf32, #tpu.memory_space<vmem>>, %arg13: memref<64x32xf32, #tpu.memory_space<vmem>>, %arg14: memref<1x16x32xf32, #tpu.memory_space<vmem>>, %arg15: memref<1x8x32xf32, #tpu.memory_space<vmem>>, %arg16: memref<1x3x32xf32, #tpu.memory_space<vmem>>) attributes {dimension_semantics = [#tpu.dimension_semantics<parallel>, #tpu.dimension_semantics<arbitrary>], iteration_bounds = array<i64: 2, 1>, scalar_prefetch = 0 : i64, scratch_operands = 2 : i64, tpu.core_type = #tpu.core_type<tc>, window_params = [{transform_indices = @transform_0, window_bounds = array<i64: 1, 16, 32>}, {pipeline_mode = #tpu.pipeline_mode<synchronous>, transform_indices = @transform_1, window_bounds = array<i64: 1, 32>}, {pipeline_mode = #tpu.pipeline_mode<synchronous>, transform_indices = @transform_2, window_bounds = array<i64: 32, 64>}, {pipeline_mode = #tpu.pipeline_mode<synchronous>, transform_indices = @transform_3, window_bounds = array<i64: 4, 32>}, {pipeline_mode = #tpu.pipeline_mode<synchronous>, transform_indices = @transform_4, window_bounds = array<i64: 1, 32>}, {pipeline_mode = #tpu.pipeline_mode<synchronous>, transform_indices = @transform_5, window_bounds = array<i64: 32, 48>}, {pipeline_mode = #tpu.pipeline_mode<synchronous>, transform_indices = @transform_6, window_bounds = array<i64: 1, 48>}, {pipeline_mode = #tpu.pipeline_mode<synchronous>, transform_indices = @transform_7, window_bounds = array<i64: 8, 32>}, {pipeline_mode = #tpu.pipeline_mode<synchronous>, transform_indices = @transform_8, window_bounds = array<i64: 32, 32>}, {pipeline_mode = #tpu.pipeline_mode<synchronous>, transform_indices = @transform_9, window_bounds = array<i64: 1, 32>}, {pipeline_mode = #tpu.pipeline_mode<synchronous>, transform_indices = @transform_10, window_bounds = array<i64: 32, 128>}, {pipeline_mode = #tpu.pipeline_mode<synchronous>, transform_indices = @transform_11, window_bounds = array<i64: 64, 32>}, {transform_indices = @transform_12, window_bounds = array<i64: 1, 16, 32>}]} {
    %c0_i32 = arith.constant 0 : i32
    %0 = arith.cmpi eq, %arg1, %c0_i32 : i32
    %1 = arith.extui %0 : i1 to i32
    %c0_i32_0 = arith.constant 0 : i32
    %2 = arith.cmpi ne, %1, %c0_i32_0 : i32
    scf.if %2 {
      %cst_81 = arith.constant 0.000000e+00 : f32
      %336 = vector.broadcast %cst_81 : f32 to vector<1x8x32xf32>
      %c0_82 = arith.constant 0 : index
      %c0_83 = arith.constant 0 : index
      %c0_84 = arith.constant 0 : index
      %337 = vector.load %arg15[%c0_82, %c0_83, %c0_84] : memref<1x8x32xf32, #tpu.memory_space<vmem>>, vector<1x8x32xf32>
      tpu.vector_store %arg15[%c0_82, %c0_83, %c0_84], %336 {strides = array<i32>} : memref<1x8x32xf32, #tpu.memory_space<vmem>>, vector<1x8x32xf32>,
      %cst_85 = arith.constant 0.000000e+00 : f32
      %338 = vector.broadcast %cst_85 : f32 to vector<1x3x32xf32>
      %c0_86 = arith.constant 0 : index
      %c0_87 = arith.constant 0 : index
      %c0_88 = arith.constant 0 : index
      %339 = vector.load %arg16[%c0_86, %c0_87, %c0_88] : memref<1x3x32xf32, #tpu.memory_space<vmem>>, vector<1x3x32xf32>
      tpu.vector_store %arg16[%c0_86, %c0_87, %c0_88], %338 {strides = array<i32>} : memref<1x3x32xf32, #tpu.memory_space<vmem>>, vector<1x3x32xf32>,
    } else {
    }
    %c0 = arith.constant 0 : index
    %c0_1 = arith.constant 0 : index
    %c0_2 = arith.constant 0 : index
    %3 = vector.load %arg2[%c0, %c0_1, %c0_2] : memref<1x16x32xf32, #tpu.memory_space<vmem>>, vector<1x16x32xf32>
    %4 = vector.shape_cast %3 : vector<1x16x32xf32> to vector<16x32xf32>
    %5 = arith.mulf %4, %4 : vector<16x32xf32>
    %cst = arith.constant dense<0.000000e+00> : vector<16xf32>
    %6 = vector.multi_reduction <add>, %5, %cst [1] : vector<16x32xf32> to vector<16xf32>
    %7 = vector.shape_cast %6 : vector<16xf32> to vector<16x1xf32>
    %cst_3 = arith.constant 9.99999996E-13 : f32
    %8 = vector.broadcast %cst_3 : f32 to vector<16x1xf32>
    %9 = arith.addf %7, %8 : vector<16x1xf32>
    %10 = math.rsqrt %9 : vector<16x1xf32>
    %11 = vector.broadcast %10 : vector<16x1xf32> to vector<16x32xf32>
    %12 = arith.mulf %4, %11 : vector<16x32xf32>
    %c0_4 = arith.constant 0 : index
    %c0_5 = arith.constant 0 : index
    %13 = vector.load %arg3[%c0_4, %c0_5] : memref<1x32xf32, #tpu.memory_space<vmem>>, vector<1x32xf32>
    %14 = vector.broadcast %13 : vector<1x32xf32> to vector<16x32xf32>
    %15 = arith.mulf %12, %14 : vector<16x32xf32>
    %c0_6 = arith.constant 0 : index
    %c0_7 = arith.constant 0 : index
    %16 = vector.load %arg4[%c0_6, %c0_7] : memref<32x64xf32, #tpu.memory_space<vmem>>, vector<32x64xf32>
    %cst_8 = arith.constant dense<0.000000e+00> : vector<16x64xf32>
    %17 = tpu.matmul %15, %16, %cst_8 {dimension_numbers = #tpu.dot_dimension_numbers<[1], [0], [0], [1], [0, 0, 1, 1], [], []>} : vector<16x32xf32>, vector<32x64xf32>, vector<16x64xf32> -> vector<16x64xf32>
    %18 = vector.extract_strided_slice %17 {offsets = [0, 0], sizes = [16, 32], strides = [1, 1]} : vector<16x64xf32> to vector<16x32xf32>
    %19 = vector.extract_strided_slice %17 {offsets = [0, 32], sizes = [16, 32], strides = [1, 1]} : vector<16x64xf32> to vector<16x32xf32>
    %20 = vector.shape_cast %19 : vector<16x32xf32> to vector<1x16x32xf32>
    %c0_9 = arith.constant 0 : index
    %c0_10 = arith.constant 0 : index
    %c0_11 = arith.constant 0 : index
    %21 = vector.load %arg16[%c0_9, %c0_10, %c0_11] : memref<1x3x32xf32, #tpu.memory_space<vmem>>, vector<1x3x32xf32>
    %22 = tpu.concatenate %21, %20 in 1 : vector<1x3x32xf32>, vector<1x16x32xf32> -> vector<1x19x32xf32>
    %cst_12 = arith.constant 0.000000e+00 : f32
    %23 = vector.broadcast %cst_12 : f32 to vector<1x16x32xf32>
    %c0_13 = arith.constant 0 : index
    %c0_14 = arith.constant 0 : index
    %24 = vector.load %arg5[%c0_13, %c0_14] : memref<4x32xf32, #tpu.memory_space<vmem>>, vector<1x32xf32>
    %25 = vector.shape_cast %24 : vector<1x32xf32> to vector<1x1x32xf32>
    %26 = vector.extract_strided_slice %22 {offsets = [0, 0, 0], sizes = [1, 16, 32], strides = [1, 1, 1]} : vector<1x19x32xf32> to vector<1x16x32xf32>
    %27 = vector.broadcast %25 : vector<1x1x32xf32> to vector<1x16x32xf32>
    %28 = arith.mulf %27, %26 : vector<1x16x32xf32>
    %29 = arith.addf %23, %28 : vector<1x16x32xf32>
    %c1 = arith.constant 1 : index
    %c0_15 = arith.constant 0 : index
    %30 = vector.load %arg5[%c1, %c0_15] : memref<4x32xf32, #tpu.memory_space<vmem>>, vector<1x32xf32>
    %31 = vector.shape_cast %30 : vector<1x32xf32> to vector<1x1x32xf32>
    %32 = vector.extract_strided_slice %22 {offsets = [0, 1, 0], sizes = [1, 16, 32], strides = [1, 1, 1]} : vector<1x19x32xf32> to vector<1x16x32xf32>
    %33 = vector.broadcast %31 : vector<1x1x32xf32> to vector<1x16x32xf32>
    %34 = arith.mulf %33, %32 : vector<1x16x32xf32>
    %35 = arith.addf %29, %34 : vector<1x16x32xf32>
    %c2 = arith.constant 2 : index
    %c0_16 = arith.constant 0 : index
    %36 = vector.load %arg5[%c2, %c0_16] : memref<4x32xf32, #tpu.memory_space<vmem>>, vector<1x32xf32>
    %37 = vector.shape_cast %36 : vector<1x32xf32> to vector<1x1x32xf32>
    %38 = vector.extract_strided_slice %22 {offsets = [0, 2, 0], sizes = [1, 16, 32], strides = [1, 1, 1]} : vector<1x19x32xf32> to vector<1x16x32xf32>
    %39 = vector.broadcast %37 : vector<1x1x32xf32> to vector<1x16x32xf32>
    %40 = arith.mulf %39, %38 : vector<1x16x32xf32>
    %41 = arith.addf %35, %40 : vector<1x16x32xf32>
    %c3 = arith.constant 3 : index
    %c0_17 = arith.constant 0 : index
    %42 = vector.load %arg5[%c3, %c0_17] : memref<4x32xf32, #tpu.memory_space<vmem>>, vector<1x32xf32>
    %43 = vector.shape_cast %42 : vector<1x32xf32> to vector<1x1x32xf32>
    %44 = vector.extract_strided_slice %22 {offsets = [0, 3, 0], sizes = [1, 16, 32], strides = [1, 1, 1]} : vector<1x19x32xf32> to vector<1x16x32xf32>
    %45 = vector.broadcast %43 : vector<1x1x32xf32> to vector<1x16x32xf32>
    %46 = arith.mulf %45, %44 : vector<1x16x32xf32>
    %47 = arith.addf %41, %46 : vector<1x16x32xf32>
    %48 = vector.extract_strided_slice %20 {offsets = [0, 13, 0], sizes = [1, 3, 32], strides = [1, 1, 1]} : vector<1x16x32xf32> to vector<1x3x32xf32>
    %c0_18 = arith.constant 0 : index
    %c0_19 = arith.constant 0 : index
    %c0_20 = arith.constant 0 : index
    %49 = vector.load %arg16[%c0_18, %c0_19, %c0_20] : memref<1x3x32xf32, #tpu.memory_space<vmem>>, vector<1x3x32xf32>
    tpu.vector_store %arg16[%c0_18, %c0_19, %c0_20], %48 {strides = array<i32>} : memref<1x3x32xf32, #tpu.memory_space<vmem>>, vector<1x3x32xf32>,
    %50 = vector.shape_cast %47 : vector<1x16x32xf32> to vector<16x32xf32>
    %c0_21 = arith.constant 0 : index
    %c0_22 = arith.constant 0 : index
    %51 = vector.load %arg6[%c0_21, %c0_22] : memref<1x32xf32, #tpu.memory_space<vmem>>, vector<1x32xf32>
    %52 = vector.broadcast %51 : vector<1x32xf32> to vector<16x32xf32>
    %53 = arith.addf %50, %52 : vector<16x32xf32>
    %c0_23 = arith.constant 0 : index
    %c0_24 = arith.constant 0 : index
    %54 = vector.load %arg7[%c0_23, %c0_24] : memref<32x48xf32, #tpu.memory_space<vmem>>, vector<32x48xf32>
    %cst_25 = arith.constant dense<0.000000e+00> : vector<16x48xf32>
    %55 = tpu.matmul %53, %54, %cst_25 {dimension_numbers = #tpu.dot_dimension_numbers<[1], [0], [0], [1], [0, 0, 1, 1], [], []>} : vector<16x32xf32>, vector<32x48xf32>, vector<16x48xf32> -> vector<16x48xf32>
    %c0_26 = arith.constant 0 : index
    %c0_27 = arith.constant 0 : index
    %56 = vector.load %arg8[%c0_26, %c0_27] : memref<1x48xf32, #tpu.memory_space<vmem>>, vector<1x48xf32>
    %57 = vector.broadcast %56 : vector<1x48xf32> to vector<16x48xf32>
    %58 = arith.addf %55, %57 : vector<16x48xf32>
    %59 = vector.extract_strided_slice %58 {offsets = [0, 0], sizes = [16, 8], strides = [1, 1]} : vector<16x48xf32> to vector<16x8xf32>
    %60 = vector.extract_strided_slice %58 {offsets = [0, 8], sizes = [16, 8], strides = [1, 1]} : vector<16x48xf32> to vector<16x8xf32>
    %61 = vector.extract_strided_slice %58 {offsets = [0, 16], sizes = [16, 32], strides = [1, 1]} : vector<16x48xf32> to vector<16x32xf32>
    %cst_28 = arith.constant 0.000000e+00 : f32
    %62 = vector.broadcast %cst_28 : f32 to vector<16x32xf32>
    %63 = arith.subf %62, %61 : vector<16x32xf32>
    %64 = math.exp %63 : vector<16x32xf32>
    %cst_29 = arith.constant 1.000000e+00 : f32
    %65 = vector.broadcast %cst_29 : f32 to vector<16x32xf32>
    %66 = arith.addf %65, %64 : vector<16x32xf32>
    %cst_30 = arith.constant 1.000000e+00 : f32
    %67 = vector.broadcast %cst_30 : f32 to vector<16x32xf32>
    %68 = arith.divf %67, %66 : vector<16x32xf32>
    %c0_31 = arith.constant 0 : index
    %c0_32 = arith.constant 0 : index
    %69 = vector.load %arg9[%c0_31, %c0_32] : memref<8x32xf32, #tpu.memory_space<vmem>>, vector<8x32xf32>
    %70 = vector.shape_cast %68 : vector<16x32xf32> to vector<1x16x1x32xf32>
    %71 = vector.shape_cast %69 : vector<8x32xf32> to vector<1x1x8x32xf32>
    %72 = vector.broadcast %70 : vector<1x16x1x32xf32> to vector<1x16x8x32xf32>
    %73 = vector.broadcast %71 : vector<1x1x8x32xf32> to vector<1x16x8x32xf32>
    %74 = arith.mulf %72, %73 : vector<1x16x8x32xf32>
    %75 = math.exp %74 : vector<1x16x8x32xf32>
    %76 = vector.shape_cast %59 : vector<16x8xf32> to vector<1x16x8x1xf32>
    %77 = vector.shape_cast %53 : vector<16x32xf32> to vector<1x16x1x32xf32>
    %78 = vector.broadcast %76 : vector<1x16x8x1xf32> to vector<1x16x8x32xf32>
    %79 = vector.broadcast %77 : vector<1x16x1x32xf32> to vector<1x16x8x32xf32>
    %80 = arith.mulf %78, %79 : vector<1x16x8x32xf32>
    %81 = arith.mulf %75, %75 : vector<1x16x8x32xf32>
    %cst_33 = arith.constant 1.000000e+00 : f32
    %82 = vector.broadcast %cst_33 : f32 to vector<1x16x8x32xf32>
    %83 = arith.subf %82, %81 : vector<1x16x8x32xf32>
    %cst_34 = arith.constant 9.99999997E-7 : f32
    %84 = vector.broadcast %cst_34 : f32 to vector<1x16x8x32xf32>
    %85 = arith.addf %83, %84 : vector<1x16x8x32xf32>
    %86 = math.sqrt %85 : vector<1x16x8x32xf32>
    %87 = arith.mulf %86, %80 : vector<1x16x8x32xf32>
    %88 = vector.shape_cast %60 : vector<16x8xf32> to vector<1x16x8x1xf32>
    %c0_35 = arith.constant 0 : index
    %c0_36 = arith.constant 0 : index
    %c0_37 = arith.constant 0 : index
    %89 = vector.load %arg15[%c0_35, %c0_36, %c0_37] : memref<1x8x32xf32, #tpu.memory_space<vmem>>, vector<1x8x32xf32>
    %90 = vector.extract_strided_slice %75 {offsets = [0, 0, 0, 0], sizes = [1, 1, 8, 32], strides = [1, 1, 1, 1]} : vector<1x16x8x32xf32> to vector<1x1x8x32xf32>
    %91 = vector.shape_cast %90 : vector<1x1x8x32xf32> to vector<1x8x32xf32>
    %92 = arith.mulf %91, %89 : vector<1x8x32xf32>
    %93 = vector.extract_strided_slice %87 {offsets = [0, 0, 0, 0], sizes = [1, 1, 8, 32], strides = [1, 1, 1, 1]} : vector<1x16x8x32xf32> to vector<1x1x8x32xf32>
    %94 = vector.shape_cast %93 : vector<1x1x8x32xf32> to vector<1x8x32xf32>
    %95 = arith.addf %92, %94 : vector<1x8x32xf32>
    %96 = vector.extract_strided_slice %88 {offsets = [0, 0, 0, 0], sizes = [1, 1, 8, 1], strides = [1, 1, 1, 1]} : vector<1x16x8x1xf32> to vector<1x1x8x1xf32>
    %97 = vector.shape_cast %96 : vector<1x1x8x1xf32> to vector<1x8x1xf32>
    %98 = vector.broadcast %97 : vector<1x8x1xf32> to vector<1x8x32xf32>
    %99 = arith.mulf %98, %95 : vector<1x8x32xf32>
    %cst_38 = arith.constant dense<0.000000e+00> : vector<1x32xf32>
    %100 = vector.multi_reduction <add>, %99, %cst_38 [1] : vector<1x8x32xf32> to vector<1x32xf32>
    %101 = vector.extract_strided_slice %75 {offsets = [0, 1, 0, 0], sizes = [1, 1, 8, 32], strides = [1, 1, 1, 1]} : vector<1x16x8x32xf32> to vector<1x1x8x32xf32>
    %102 = vector.shape_cast %101 : vector<1x1x8x32xf32> to vector<1x8x32xf32>
    %103 = arith.mulf %102, %95 : vector<1x8x32xf32>
    %104 = vector.extract_strided_slice %87 {offsets = [0, 1, 0, 0], sizes = [1, 1, 8, 32], strides = [1, 1, 1, 1]} : vector<1x16x8x32xf32> to vector<1x1x8x32xf32>
    %105 = vector.shape_cast %104 : vector<1x1x8x32xf32> to vector<1x8x32xf32>
    %106 = arith.addf %103, %105 : vector<1x8x32xf32>
    %107 = vector.extract_strided_slice %88 {offsets = [0, 1, 0, 0], sizes = [1, 1, 8, 1], strides = [1, 1, 1, 1]} : vector<1x16x8x1xf32> to vector<1x1x8x1xf32>
    %108 = vector.shape_cast %107 : vector<1x1x8x1xf32> to vector<1x8x1xf32>
    %109 = vector.broadcast %108 : vector<1x8x1xf32> to vector<1x8x32xf32>
    %110 = arith.mulf %109, %106 : vector<1x8x32xf32>
    %cst_39 = arith.constant dense<0.000000e+00> : vector<1x32xf32>
    %111 = vector.multi_reduction <add>, %110, %cst_39 [1] : vector<1x8x32xf32> to vector<1x32xf32>
    %112 = vector.extract_strided_slice %75 {offsets = [0, 2, 0, 0], sizes = [1, 1, 8, 32], strides = [1, 1, 1, 1]} : vector<1x16x8x32xf32> to vector<1x1x8x32xf32>
    %113 = vector.shape_cast %112 : vector<1x1x8x32xf32> to vector<1x8x32xf32>
    %114 = arith.mulf %113, %106 : vector<1x8x32xf32>
    %115 = vector.extract_strided_slice %87 {offsets = [0, 2, 0, 0], sizes = [1, 1, 8, 32], strides = [1, 1, 1, 1]} : vector<1x16x8x32xf32> to vector<1x1x8x32xf32>
    %116 = vector.shape_cast %115 : vector<1x1x8x32xf32> to vector<1x8x32xf32>
    %117 = arith.addf %114, %116 : vector<1x8x32xf32>
    %118 = vector.extract_strided_slice %88 {offsets = [0, 2, 0, 0], sizes = [1, 1, 8, 1], strides = [1, 1, 1, 1]} : vector<1x16x8x1xf32> to vector<1x1x8x1xf32>
    %119 = vector.shape_cast %118 : vector<1x1x8x1xf32> to vector<1x8x1xf32>
    %120 = vector.broadcast %119 : vector<1x8x1xf32> to vector<1x8x32xf32>
    %121 = arith.mulf %120, %117 : vector<1x8x32xf32>
    %cst_40 = arith.constant dense<0.000000e+00> : vector<1x32xf32>
    %122 = vector.multi_reduction <add>, %121, %cst_40 [1] : vector<1x8x32xf32> to vector<1x32xf32>
    %123 = vector.extract_strided_slice %75 {offsets = [0, 3, 0, 0], sizes = [1, 1, 8, 32], strides = [1, 1, 1, 1]} : vector<1x16x8x32xf32> to vector<1x1x8x32xf32>
    %124 = vector.shape_cast %123 : vector<1x1x8x32xf32> to vector<1x8x32xf32>
    %125 = arith.mulf %124, %117 : vector<1x8x32xf32>
    %126 = vector.extract_strided_slice %87 {offsets = [0, 3, 0, 0], sizes = [1, 1, 8, 32], strides = [1, 1, 1, 1]} : vector<1x16x8x32xf32> to vector<1x1x8x32xf32>
    %127 = vector.shape_cast %126 : vector<1x1x8x32xf32> to vector<1x8x32xf32>
    %128 = arith.addf %125, %127 : vector<1x8x32xf32>
    %129 = vector.extract_strided_slice %88 {offsets = [0, 3, 0, 0], sizes = [1, 1, 8, 1], strides = [1, 1, 1, 1]} : vector<1x16x8x1xf32> to vector<1x1x8x1xf32>
    %130 = vector.shape_cast %129 : vector<1x1x8x1xf32> to vector<1x8x1xf32>
    %131 = vector.broadcast %130 : vector<1x8x1xf32> to vector<1x8x32xf32>
    %132 = arith.mulf %131, %128 : vector<1x8x32xf32>
    %cst_41 = arith.constant dense<0.000000e+00> : vector<1x32xf32>
    %133 = vector.multi_reduction <add>, %132, %cst_41 [1] : vector<1x8x32xf32> to vector<1x32xf32>
    %134 = vector.extract_strided_slice %75 {offsets = [0, 4, 0, 0], sizes = [1, 1, 8, 32], strides = [1, 1, 1, 1]} : vector<1x16x8x32xf32> to vector<1x1x8x32xf32>
    %135 = vector.shape_cast %134 : vector<1x1x8x32xf32> to vector<1x8x32xf32>
    %136 = arith.mulf %135, %128 : vector<1x8x32xf32>
    %137 = vector.extract_strided_slice %87 {offsets = [0, 4, 0, 0], sizes = [1, 1, 8, 32], strides = [1, 1, 1, 1]} : vector<1x16x8x32xf32> to vector<1x1x8x32xf32>
    %138 = vector.shape_cast %137 : vector<1x1x8x32xf32> to vector<1x8x32xf32>
    %139 = arith.addf %136, %138 : vector<1x8x32xf32>
    %140 = vector.extract_strided_slice %88 {offsets = [0, 4, 0, 0], sizes = [1, 1, 8, 1], strides = [1, 1, 1, 1]} : vector<1x16x8x1xf32> to vector<1x1x8x1xf32>
    %141 = vector.shape_cast %140 : vector<1x1x8x1xf32> to vector<1x8x1xf32>
    %142 = vector.broadcast %141 : vector<1x8x1xf32> to vector<1x8x32xf32>
    %143 = arith.mulf %142, %139 : vector<1x8x32xf32>
    %cst_42 = arith.constant dense<0.000000e+00> : vector<1x32xf32>
    %144 = vector.multi_reduction <add>, %143, %cst_42 [1] : vector<1x8x32xf32> to vector<1x32xf32>
    %145 = vector.extract_strided_slice %75 {offsets = [0, 5, 0, 0], sizes = [1, 1, 8, 32], strides = [1, 1, 1, 1]} : vector<1x16x8x32xf32> to vector<1x1x8x32xf32>
    %146 = vector.shape_cast %145 : vector<1x1x8x32xf32> to vector<1x8x32xf32>
    %147 = arith.mulf %146, %139 : vector<1x8x32xf32>
    %148 = vector.extract_strided_slice %87 {offsets = [0, 5, 0, 0], sizes = [1, 1, 8, 32], strides = [1, 1, 1, 1]} : vector<1x16x8x32xf32> to vector<1x1x8x32xf32>
    %149 = vector.shape_cast %148 : vector<1x1x8x32xf32> to vector<1x8x32xf32>
    %150 = arith.addf %147, %149 : vector<1x8x32xf32>
    %151 = vector.extract_strided_slice %88 {offsets = [0, 5, 0, 0], sizes = [1, 1, 8, 1], strides = [1, 1, 1, 1]} : vector<1x16x8x1xf32> to vector<1x1x8x1xf32>
    %152 = vector.shape_cast %151 : vector<1x1x8x1xf32> to vector<1x8x1xf32>
    %153 = vector.broadcast %152 : vector<1x8x1xf32> to vector<1x8x32xf32>
    %154 = arith.mulf %153, %150 : vector<1x8x32xf32>
    %cst_43 = arith.constant dense<0.000000e+00> : vector<1x32xf32>
    %155 = vector.multi_reduction <add>, %154, %cst_43 [1] : vector<1x8x32xf32> to vector<1x32xf32>
    %156 = vector.extract_strided_slice %75 {offsets = [0, 6, 0, 0], sizes = [1, 1, 8, 32], strides = [1, 1, 1, 1]} : vector<1x16x8x32xf32> to vector<1x1x8x32xf32>
    %157 = vector.shape_cast %156 : vector<1x1x8x32xf32> to vector<1x8x32xf32>
    %158 = arith.mulf %157, %150 : vector<1x8x32xf32>
    %159 = vector.extract_strided_slice %87 {offsets = [0, 6, 0, 0], sizes = [1, 1, 8, 32], strides = [1, 1, 1, 1]} : vector<1x16x8x32xf32> to vector<1x1x8x32xf32>
    %160 = vector.shape_cast %159 : vector<1x1x8x32xf32> to vector<1x8x32xf32>
    %161 = arith.addf %158, %160 : vector<1x8x32xf32>
    %162 = vector.extract_strided_slice %88 {offsets = [0, 6, 0, 0], sizes = [1, 1, 8, 1], strides = [1, 1, 1, 1]} : vector<1x16x8x1xf32> to vector<1x1x8x1xf32>
    %163 = vector.shape_cast %162 : vector<1x1x8x1xf32> to vector<1x8x1xf32>
    %164 = vector.broadcast %163 : vector<1x8x1xf32> to vector<1x8x32xf32>
    %165 = arith.mulf %164, %161 : vector<1x8x32xf32>
    %cst_44 = arith.constant dense<0.000000e+00> : vector<1x32xf32>
    %166 = vector.multi_reduction <add>, %165, %cst_44 [1] : vector<1x8x32xf32> to vector<1x32xf32>
    %167 = vector.extract_strided_slice %75 {offsets = [0, 7, 0, 0], sizes = [1, 1, 8, 32], strides = [1, 1, 1, 1]} : vector<1x16x8x32xf32> to vector<1x1x8x32xf32>
    %168 = vector.shape_cast %167 : vector<1x1x8x32xf32> to vector<1x8x32xf32>
    %169 = arith.mulf %168, %161 : vector<1x8x32xf32>
    %170 = vector.extract_strided_slice %87 {offsets = [0, 7, 0, 0], sizes = [1, 1, 8, 32], strides = [1, 1, 1, 1]} : vector<1x16x8x32xf32> to vector<1x1x8x32xf32>
    %171 = vector.shape_cast %170 : vector<1x1x8x32xf32> to vector<1x8x32xf32>
    %172 = arith.addf %169, %171 : vector<1x8x32xf32>
    %173 = vector.extract_strided_slice %88 {offsets = [0, 7, 0, 0], sizes = [1, 1, 8, 1], strides = [1, 1, 1, 1]} : vector<1x16x8x1xf32> to vector<1x1x8x1xf32>
    %174 = vector.shape_cast %173 : vector<1x1x8x1xf32> to vector<1x8x1xf32>
    %175 = vector.broadcast %174 : vector<1x8x1xf32> to vector<1x8x32xf32>
    %176 = arith.mulf %175, %172 : vector<1x8x32xf32>
    %cst_45 = arith.constant dense<0.000000e+00> : vector<1x32xf32>
    %177 = vector.multi_reduction <add>, %176, %cst_45 [1] : vector<1x8x32xf32> to vector<1x32xf32>
    %178 = vector.extract_strided_slice %75 {offsets = [0, 8, 0, 0], sizes = [1, 1, 8, 32], strides = [1, 1, 1, 1]} : vector<1x16x8x32xf32> to vector<1x1x8x32xf32>
    %179 = vector.shape_cast %178 : vector<1x1x8x32xf32> to vector<1x8x32xf32>
    %180 = arith.mulf %179, %172 : vector<1x8x32xf32>
    %181 = vector.extract_strided_slice %87 {offsets = [0, 8, 0, 0], sizes = [1, 1, 8, 32], strides = [1, 1, 1, 1]} : vector<1x16x8x32xf32> to vector<1x1x8x32xf32>
    %182 = vector.shape_cast %181 : vector<1x1x8x32xf32> to vector<1x8x32xf32>
    %183 = arith.addf %180, %182 : vector<1x8x32xf32>
    %184 = vector.extract_strided_slice %88 {offsets = [0, 8, 0, 0], sizes = [1, 1, 8, 1], strides = [1, 1, 1, 1]} : vector<1x16x8x1xf32> to vector<1x1x8x1xf32>
    %185 = vector.shape_cast %184 : vector<1x1x8x1xf32> to vector<1x8x1xf32>
    %186 = vector.broadcast %185 : vector<1x8x1xf32> to vector<1x8x32xf32>
    %187 = arith.mulf %186, %183 : vector<1x8x32xf32>
    %cst_46 = arith.constant dense<0.000000e+00> : vector<1x32xf32>
    %188 = vector.multi_reduction <add>, %187, %cst_46 [1] : vector<1x8x32xf32> to vector<1x32xf32>
    %189 = vector.extract_strided_slice %75 {offsets = [0, 9, 0, 0], sizes = [1, 1, 8, 32], strides = [1, 1, 1, 1]} : vector<1x16x8x32xf32> to vector<1x1x8x32xf32>
    %190 = vector.shape_cast %189 : vector<1x1x8x32xf32> to vector<1x8x32xf32>
    %191 = arith.mulf %190, %183 : vector<1x8x32xf32>
    %192 = vector.extract_strided_slice %87 {offsets = [0, 9, 0, 0], sizes = [1, 1, 8, 32], strides = [1, 1, 1, 1]} : vector<1x16x8x32xf32> to vector<1x1x8x32xf32>
    %193 = vector.shape_cast %192 : vector<1x1x8x32xf32> to vector<1x8x32xf32>
    %194 = arith.addf %191, %193 : vector<1x8x32xf32>
    %195 = vector.extract_strided_slice %88 {offsets = [0, 9, 0, 0], sizes = [1, 1, 8, 1], strides = [1, 1, 1, 1]} : vector<1x16x8x1xf32> to vector<1x1x8x1xf32>
    %196 = vector.shape_cast %195 : vector<1x1x8x1xf32> to vector<1x8x1xf32>
    %197 = vector.broadcast %196 : vector<1x8x1xf32> to vector<1x8x32xf32>
    %198 = arith.mulf %197, %194 : vector<1x8x32xf32>
    %cst_47 = arith.constant dense<0.000000e+00> : vector<1x32xf32>
    %199 = vector.multi_reduction <add>, %198, %cst_47 [1] : vector<1x8x32xf32> to vector<1x32xf32>
    %200 = vector.extract_strided_slice %75 {offsets = [0, 10, 0, 0], sizes = [1, 1, 8, 32], strides = [1, 1, 1, 1]} : vector<1x16x8x32xf32> to vector<1x1x8x32xf32>
    %201 = vector.shape_cast %200 : vector<1x1x8x32xf32> to vector<1x8x32xf32>
    %202 = arith.mulf %201, %194 : vector<1x8x32xf32>
    %203 = vector.extract_strided_slice %87 {offsets = [0, 10, 0, 0], sizes = [1, 1, 8, 32], strides = [1, 1, 1, 1]} : vector<1x16x8x32xf32> to vector<1x1x8x32xf32>
    %204 = vector.shape_cast %203 : vector<1x1x8x32xf32> to vector<1x8x32xf32>
    %205 = arith.addf %202, %204 : vector<1x8x32xf32>
    %206 = vector.extract_strided_slice %88 {offsets = [0, 10, 0, 0], sizes = [1, 1, 8, 1], strides = [1, 1, 1, 1]} : vector<1x16x8x1xf32> to vector<1x1x8x1xf32>
    %207 = vector.shape_cast %206 : vector<1x1x8x1xf32> to vector<1x8x1xf32>
    %208 = vector.broadcast %207 : vector<1x8x1xf32> to vector<1x8x32xf32>
    %209 = arith.mulf %208, %205 : vector<1x8x32xf32>
    %cst_48 = arith.constant dense<0.000000e+00> : vector<1x32xf32>
    %210 = vector.multi_reduction <add>, %209, %cst_48 [1] : vector<1x8x32xf32> to vector<1x32xf32>
    %211 = vector.extract_strided_slice %75 {offsets = [0, 11, 0, 0], sizes = [1, 1, 8, 32], strides = [1, 1, 1, 1]} : vector<1x16x8x32xf32> to vector<1x1x8x32xf32>
    %212 = vector.shape_cast %211 : vector<1x1x8x32xf32> to vector<1x8x32xf32>
    %213 = arith.mulf %212, %205 : vector<1x8x32xf32>
    %214 = vector.extract_strided_slice %87 {offsets = [0, 11, 0, 0], sizes = [1, 1, 8, 32], strides = [1, 1, 1, 1]} : vector<1x16x8x32xf32> to vector<1x1x8x32xf32>
    %215 = vector.shape_cast %214 : vector<1x1x8x32xf32> to vector<1x8x32xf32>
    %216 = arith.addf %213, %215 : vector<1x8x32xf32>
    %217 = vector.extract_strided_slice %88 {offsets = [0, 11, 0, 0], sizes = [1, 1, 8, 1], strides = [1, 1, 1, 1]} : vector<1x16x8x1xf32> to vector<1x1x8x1xf32>
    %218 = vector.shape_cast %217 : vector<1x1x8x1xf32> to vector<1x8x1xf32>
    %219 = vector.broadcast %218 : vector<1x8x1xf32> to vector<1x8x32xf32>
    %220 = arith.mulf %219, %216 : vector<1x8x32xf32>
    %cst_49 = arith.constant dense<0.000000e+00> : vector<1x32xf32>
    %221 = vector.multi_reduction <add>, %220, %cst_49 [1] : vector<1x8x32xf32> to vector<1x32xf32>
    %222 = vector.extract_strided_slice %75 {offsets = [0, 12, 0, 0], sizes = [1, 1, 8, 32], strides = [1, 1, 1, 1]} : vector<1x16x8x32xf32> to vector<1x1x8x32xf32>
    %223 = vector.shape_cast %222 : vector<1x1x8x32xf32> to vector<1x8x32xf32>
    %224 = arith.mulf %223, %216 : vector<1x8x32xf32>
    %225 = vector.extract_strided_slice %87 {offsets = [0, 12, 0, 0], sizes = [1, 1, 8, 32], strides = [1, 1, 1, 1]} : vector<1x16x8x32xf32> to vector<1x1x8x32xf32>
    %226 = vector.shape_cast %225 : vector<1x1x8x32xf32> to vector<1x8x32xf32>
    %227 = arith.addf %224, %226 : vector<1x8x32xf32>
    %228 = vector.extract_strided_slice %88 {offsets = [0, 12, 0, 0], sizes = [1, 1, 8, 1], strides = [1, 1, 1, 1]} : vector<1x16x8x1xf32> to vector<1x1x8x1xf32>
    %229 = vector.shape_cast %228 : vector<1x1x8x1xf32> to vector<1x8x1xf32>
    %230 = vector.broadcast %229 : vector<1x8x1xf32> to vector<1x8x32xf32>
    %231 = arith.mulf %230, %227 : vector<1x8x32xf32>
    %cst_50 = arith.constant dense<0.000000e+00> : vector<1x32xf32>
    %232 = vector.multi_reduction <add>, %231, %cst_50 [1] : vector<1x8x32xf32> to vector<1x32xf32>
    %233 = vector.extract_strided_slice %75 {offsets = [0, 13, 0, 0], sizes = [1, 1, 8, 32], strides = [1, 1, 1, 1]} : vector<1x16x8x32xf32> to vector<1x1x8x32xf32>
    %234 = vector.shape_cast %233 : vector<1x1x8x32xf32> to vector<1x8x32xf32>
    %235 = arith.mulf %234, %227 : vector<1x8x32xf32>
    %236 = vector.extract_strided_slice %87 {offsets = [0, 13, 0, 0], sizes = [1, 1, 8, 32], strides = [1, 1, 1, 1]} : vector<1x16x8x32xf32> to vector<1x1x8x32xf32>
    %237 = vector.shape_cast %236 : vector<1x1x8x32xf32> to vector<1x8x32xf32>
    %238 = arith.addf %235, %237 : vector<1x8x32xf32>
    %239 = vector.extract_strided_slice %88 {offsets = [0, 13, 0, 0], sizes = [1, 1, 8, 1], strides = [1, 1, 1, 1]} : vector<1x16x8x1xf32> to vector<1x1x8x1xf32>
    %240 = vector.shape_cast %239 : vector<1x1x8x1xf32> to vector<1x8x1xf32>
    %241 = vector.broadcast %240 : vector<1x8x1xf32> to vector<1x8x32xf32>
    %242 = arith.mulf %241, %238 : vector<1x8x32xf32>
    %cst_51 = arith.constant dense<0.000000e+00> : vector<1x32xf32>
    %243 = vector.multi_reduction <add>, %242, %cst_51 [1] : vector<1x8x32xf32> to vector<1x32xf32>
    %244 = vector.extract_strided_slice %75 {offsets = [0, 14, 0, 0], sizes = [1, 1, 8, 32], strides = [1, 1, 1, 1]} : vector<1x16x8x32xf32> to vector<1x1x8x32xf32>
    %245 = vector.shape_cast %244 : vector<1x1x8x32xf32> to vector<1x8x32xf32>
    %246 = arith.mulf %245, %238 : vector<1x8x32xf32>
    %247 = vector.extract_strided_slice %87 {offsets = [0, 14, 0, 0], sizes = [1, 1, 8, 32], strides = [1, 1, 1, 1]} : vector<1x16x8x32xf32> to vector<1x1x8x32xf32>
    %248 = vector.shape_cast %247 : vector<1x1x8x32xf32> to vector<1x8x32xf32>
    %249 = arith.addf %246, %248 : vector<1x8x32xf32>
    %250 = vector.extract_strided_slice %88 {offsets = [0, 14, 0, 0], sizes = [1, 1, 8, 1], strides = [1, 1, 1, 1]} : vector<1x16x8x1xf32> to vector<1x1x8x1xf32>
    %251 = vector.shape_cast %250 : vector<1x1x8x1xf32> to vector<1x8x1xf32>
    %252 = vector.broadcast %251 : vector<1x8x1xf32> to vector<1x8x32xf32>
    %253 = arith.mulf %252, %249 : vector<1x8x32xf32>
    %cst_52 = arith.constant dense<0.000000e+00> : vector<1x32xf32>
    %254 = vector.multi_reduction <add>, %253, %cst_52 [1] : vector<1x8x32xf32> to vector<1x32xf32>
    %255 = vector.extract_strided_slice %75 {offsets = [0, 15, 0, 0], sizes = [1, 1, 8, 32], strides = [1, 1, 1, 1]} : vector<1x16x8x32xf32> to vector<1x1x8x32xf32>
    %256 = vector.shape_cast %255 : vector<1x1x8x32xf32> to vector<1x8x32xf32>
    %257 = arith.mulf %256, %249 : vector<1x8x32xf32>
    %258 = vector.extract_strided_slice %87 {offsets = [0, 15, 0, 0], sizes = [1, 1, 8, 32], strides = [1, 1, 1, 1]} : vector<1x16x8x32xf32> to vector<1x1x8x32xf32>
    %259 = vector.shape_cast %258 : vector<1x1x8x32xf32> to vector<1x8x32xf32>
    %260 = arith.addf %257, %259 : vector<1x8x32xf32>
    %261 = vector.extract_strided_slice %88 {offsets = [0, 15, 0, 0], sizes = [1, 1, 8, 1], strides = [1, 1, 1, 1]} : vector<1x16x8x1xf32> to vector<1x1x8x1xf32>
    %262 = vector.shape_cast %261 : vector<1x1x8x1xf32> to vector<1x8x1xf32>
    %263 = vector.broadcast %262 : vector<1x8x1xf32> to vector<1x8x32xf32>
    %264 = arith.mulf %263, %260 : vector<1x8x32xf32>
    %cst_53 = arith.constant dense<0.000000e+00> : vector<1x32xf32>
    %265 = vector.multi_reduction <add>, %264, %cst_53 [1] : vector<1x8x32xf32> to vector<1x32xf32>
    %c0_54 = arith.constant 0 : index
    %c0_55 = arith.constant 0 : index
    %c0_56 = arith.constant 0 : index
    %266 = vector.load %arg15[%c0_54, %c0_55, %c0_56] : memref<1x8x32xf32, #tpu.memory_space<vmem>>, vector<1x8x32xf32>
    tpu.vector_store %arg15[%c0_54, %c0_55, %c0_56], %260 {strides = array<i32>} : memref<1x8x32xf32, #tpu.memory_space<vmem>>, vector<1x8x32xf32>,
    %267 = vector.shape_cast %100 : vector<1x32xf32> to vector<1x1x32xf32>
    %268 = vector.shape_cast %111 : vector<1x32xf32> to vector<1x1x32xf32>
    %269 = vector.shape_cast %122 : vector<1x32xf32> to vector<1x1x32xf32>
    %270 = vector.shape_cast %133 : vector<1x32xf32> to vector<1x1x32xf32>
    %271 = vector.shape_cast %144 : vector<1x32xf32> to vector<1x1x32xf32>
    %272 = vector.shape_cast %155 : vector<1x32xf32> to vector<1x1x32xf32>
    %273 = vector.shape_cast %166 : vector<1x32xf32> to vector<1x1x32xf32>
    %274 = vector.shape_cast %177 : vector<1x32xf32> to vector<1x1x32xf32>
    %275 = vector.shape_cast %188 : vector<1x32xf32> to vector<1x1x32xf32>
    %276 = vector.shape_cast %199 : vector<1x32xf32> to vector<1x1x32xf32>
    %277 = vector.shape_cast %210 : vector<1x32xf32> to vector<1x1x32xf32>
    %278 = vector.shape_cast %221 : vector<1x32xf32> to vector<1x1x32xf32>
    %279 = vector.shape_cast %232 : vector<1x32xf32> to vector<1x1x32xf32>
    %280 = vector.shape_cast %243 : vector<1x32xf32> to vector<1x1x32xf32>
    %281 = vector.shape_cast %254 : vector<1x32xf32> to vector<1x1x32xf32>
    %282 = vector.shape_cast %265 : vector<1x32xf32> to vector<1x1x32xf32>
    %283 = tpu.concatenate %267, %268, %269, %270, %271, %272, %273, %274, %275, %276, %277, %278, %279, %280, %281, %282 in 1 : vector<1x1x32xf32>, vector<1x1x32xf32>, vector<1x1x32xf32>, vector<1x1x32xf32>, vector<1x1x32xf32>, vector<1x1x32xf32>, vector<1x1x32xf32>, vector<1x1x32xf32>, vector<1x1x32xf32>, vector<1x1x32xf32>, vector<1x1x32xf32>, vector<1x1x32xf32>, vector<1x1x32xf32>, vector<1x1x32xf32>, vector<1x1x32xf32>, vector<1x1x32xf32> -> vector<1x16x32xf32>
    %284 = vector.shape_cast %283 : vector<1x16x32xf32> to vector<16x32xf32>
    %cst_57 = arith.constant 5.000000e-01 : f32
    %285 = vector.broadcast %cst_57 : f32 to vector<16x32xf32>
    %286 = arith.mulf %285, %18 : vector<16x32xf32>
    %cst_58 = arith.constant 4.471500e-02 : f32
    %287 = vector.broadcast %cst_58 : f32 to vector<16x32xf32>
    %288 = arith.mulf %287, %18 : vector<16x32xf32>
    %289 = arith.mulf %288, %18 : vector<16x32xf32>
    %290 = arith.mulf %289, %18 : vector<16x32xf32>
    %291 = arith.addf %18, %290 : vector<16x32xf32>
    %cst_59 = arith.constant 0.797884583 : f32
    %292 = vector.broadcast %cst_59 : f32 to vector<16x32xf32>
    %293 = arith.mulf %292, %291 : vector<16x32xf32>
    %294 = math.tanh %293 : vector<16x32xf32>
    %cst_60 = arith.constant 1.000000e+00 : f32
    %295 = vector.broadcast %cst_60 : f32 to vector<16x32xf32>
    %296 = arith.addf %295, %294 : vector<16x32xf32>
    %297 = arith.mulf %286, %296 : vector<16x32xf32>
    %298 = arith.mulf %297, %284 : vector<16x32xf32>
    %c0_61 = arith.constant 0 : index
    %c0_62 = arith.constant 0 : index
    %299 = vector.load %arg10[%c0_61, %c0_62] : memref<32x32xf32, #tpu.memory_space<vmem>>, vector<32x32xf32>
    %cst_63 = arith.constant dense<0.000000e+00> : vector<16x32xf32>
    %300 = tpu.matmul %298, %299, %cst_63 {dimension_numbers = #tpu.dot_dimension_numbers<[1], [0], [0], [1], [0, 0, 1, 1], [], []>} : vector<16x32xf32>, vector<32x32xf32>, vector<16x32xf32> -> vector<16x32xf32>
    %301 = arith.addf %4, %300 : vector<16x32xf32>
    %302 = arith.mulf %301, %301 : vector<16x32xf32>
    %cst_64 = arith.constant dense<0.000000e+00> : vector<16xf32>
    %303 = vector.multi_reduction <add>, %302, %cst_64 [1] : vector<16x32xf32> to vector<16xf32>
    %304 = vector.shape_cast %303 : vector<16xf32> to vector<16x1xf32>
    %cst_65 = arith.constant 9.99999996E-13 : f32
    %305 = vector.broadcast %cst_65 : f32 to vector<16x1xf32>
    %306 = arith.addf %304, %305 : vector<16x1xf32>
    %307 = math.rsqrt %306 : vector<16x1xf32>
    %308 = vector.broadcast %307 : vector<16x1xf32> to vector<16x32xf32>
    %309 = arith.mulf %301, %308 : vector<16x32xf32>
    %c0_66 = arith.constant 0 : index
    %c0_67 = arith.constant 0 : index
    %310 = vector.load %arg11[%c0_66, %c0_67] : memref<1x32xf32, #tpu.memory_space<vmem>>, vector<1x32xf32>
    %311 = vector.broadcast %310 : vector<1x32xf32> to vector<16x32xf32>
    %312 = arith.mulf %309, %311 : vector<16x32xf32>
    %c0_68 = arith.constant 0 : index
    %c0_69 = arith.constant 0 : index
    %313 = vector.load %arg12[%c0_68, %c0_69] : memref<32x128xf32, #tpu.memory_space<vmem>>, vector<32x128xf32>
    %cst_70 = arith.constant dense<0.000000e+00> : vector<16x128xf32>
    %314 = tpu.matmul %312, %313, %cst_70 {dimension_numbers = #tpu.dot_dimension_numbers<[1], [0], [0], [1], [0, 0, 1, 1], [], []>} : vector<16x32xf32>, vector<32x128xf32>, vector<16x128xf32> -> vector<16x128xf32>
    %315 = vector.extract_strided_slice %314 {offsets = [0, 0], sizes = [16, 64], strides = [1, 1]} : vector<16x128xf32> to vector<16x64xf32>
    %cst_71 = arith.constant 5.000000e-01 : f32
    %316 = vector.broadcast %cst_71 : f32 to vector<16x64xf32>
    %317 = arith.mulf %316, %315 : vector<16x64xf32>
    %cst_72 = arith.constant 4.471500e-02 : f32
    %318 = vector.broadcast %cst_72 : f32 to vector<16x64xf32>
    %319 = arith.mulf %318, %315 : vector<16x64xf32>
    %320 = arith.mulf %319, %315 : vector<16x64xf32>
    %321 = arith.mulf %320, %315 : vector<16x64xf32>
    %322 = arith.addf %315, %321 : vector<16x64xf32>
    %cst_73 = arith.constant 0.797884583 : f32
    %323 = vector.broadcast %cst_73 : f32 to vector<16x64xf32>
    %324 = arith.mulf %323, %322 : vector<16x64xf32>
    %325 = math.tanh %324 : vector<16x64xf32>
    %cst_74 = arith.constant 1.000000e+00 : f32
    %326 = vector.broadcast %cst_74 : f32 to vector<16x64xf32>
    %327 = arith.addf %326, %325 : vector<16x64xf32>
    %328 = arith.mulf %317, %327 : vector<16x64xf32>
    %329 = vector.extract_strided_slice %314 {offsets = [0, 64], sizes = [16, 64], strides = [1, 1]} : vector<16x128xf32> to vector<16x64xf32>
    %330 = arith.mulf %328, %329 : vector<16x64xf32>
    %c0_75 = arith.constant 0 : index
    %c0_76 = arith.constant 0 : index
    %331 = vector.load %arg13[%c0_75, %c0_76] : memref<64x32xf32, #tpu.memory_space<vmem>>, vector<64x32xf32>
    %cst_77 = arith.constant dense<0.000000e+00> : vector<16x32xf32>
    %332 = tpu.matmul %330, %331, %cst_77 {dimension_numbers = #tpu.dot_dimension_numbers<[1], [0], [0], [1], [0, 0, 1, 1], [], []>} : vector<16x64xf32>, vector<64x32xf32>, vector<16x32xf32> -> vector<16x32xf32>
    %333 = arith.addf %301, %332 : vector<16x32xf32>
    %334 = vector.shape_cast %333 : vector<16x32xf32> to vector<1x16x32xf32>
    %c0_78 = arith.constant 0 : index
    %c0_79 = arith.constant 0 : index
    %c0_80 = arith.constant 0 : index
    %335 = vector.load %arg14[%c0_78, %c0_79, %c0_80] : memref<1x16x32xf32, #tpu.memory_space<vmem>>, vector<1x16x32xf32>
    tpu.vector_store %arg14[%c0_78, %c0_79, %c0_80], %334 {strides = array<i32>} : memref<1x16x32xf32, #tpu.memory_space<vmem>>, vector<1x16x32xf32>,
    return
  }
  func.func @transform_0(%arg0: i32, %arg1: i32) -> (i32, i32, i32) {
    %c0_i32 = arith.constant 0 : i32
    %c0_i32_0 = arith.constant 0 : i32
    return %arg0, %arg1, %c0_i32 : i32, i32, i32
  }
  func.func @transform_1(%arg0: i32, %arg1: i32) -> (i32, i32) {
    %c0_i32 = arith.constant 0 : i32
    %c0_i32_0 = arith.constant 0 : i32
    %c0_i32_1 = arith.constant 0 : i32
    return %c0_i32, %c0_i32_0 : i32, i32
  }
  func.func @transform_2(%arg0: i32, %arg1: i32) -> (i32, i32) {
    %c0_i32 = arith.constant 0 : i32
    %c0_i32_0 = arith.constant 0 : i32
    %c0_i32_1 = arith.constant 0 : i32
    return %c0_i32, %c0_i32_0 : i32, i32
  }
  func.func @transform_3(%arg0: i32, %arg1: i32) -> (i32, i32) {
    %c0_i32 = arith.constant 0 : i32
    %c0_i32_0 = arith.constant 0 : i32
    %c0_i32_1 = arith.constant 0 : i32
    return %c0_i32, %c0_i32_0 : i32, i32
  }
  func.func @transform_4(%arg0: i32, %arg1: i32) -> (i32, i32) {
    %c0_i32 = arith.constant 0 : i32
    %c0_i32_0 = arith.constant 0 : i32
    %c0_i32_1 = arith.constant 0 : i32
    return %c0_i32, %c0_i32_0 : i32, i32
  }
  func.func @transform_5(%arg0: i32, %arg1: i32) -> (i32, i32) {
    %c0_i32 = arith.constant 0 : i32
    %c0_i32_0 = arith.constant 0 : i32
    %c0_i32_1 = arith.constant 0 : i32
    return %c0_i32, %c0_i32_0 : i32, i32
  }
  func.func @transform_6(%arg0: i32, %arg1: i32) -> (i32, i32) {
    %c0_i32 = arith.constant 0 : i32
    %c0_i32_0 = arith.constant 0 : i32
    %c0_i32_1 = arith.constant 0 : i32
    return %c0_i32, %c0_i32_0 : i32, i32
  }
  func.func @transform_7(%arg0: i32, %arg1: i32) -> (i32, i32) {
    %c0_i32 = arith.constant 0 : i32
    %c0_i32_0 = arith.constant 0 : i32
    %c0_i32_1 = arith.constant 0 : i32
    return %c0_i32, %c0_i32_0 : i32, i32
  }
  func.func @transform_8(%arg0: i32, %arg1: i32) -> (i32, i32) {
    %c0_i32 = arith.constant 0 : i32
    %c0_i32_0 = arith.constant 0 : i32
    %c0_i32_1 = arith.constant 0 : i32
    return %c0_i32, %c0_i32_0 : i32, i32
  }
  func.func @transform_9(%arg0: i32, %arg1: i32) -> (i32, i32) {
    %c0_i32 = arith.constant 0 : i32
    %c0_i32_0 = arith.constant 0 : i32
    %c0_i32_1 = arith.constant 0 : i32
    return %c0_i32, %c0_i32_0 : i32, i32
  }
  func.func @transform_10(%arg0: i32, %arg1: i32) -> (i32, i32) {
    %c0_i32 = arith.constant 0 : i32
    %c0_i32_0 = arith.constant 0 : i32
    %c0_i32_1 = arith.constant 0 : i32
    return %c0_i32, %c0_i32_0 : i32, i32
  }
  func.func @transform_11(%arg0: i32, %arg1: i32) -> (i32, i32) {
    %c0_i32 = arith.constant 0 : i32
    %c0_i32_0 = arith.constant 0 : i32
    %c0_i32_1 = arith.constant 0 : i32
    return %c0_i32, %c0_i32_0 : i32, i32
  }
  func.func @transform_12(%arg0: i32, %arg1: i32) -> (i32, i32, i32) {
    %c0_i32 = arith.constant 0 : i32
    %c0_i32_0 = arith.constant 0 : i32
    return %arg0, %arg1, %c0_i32 : i32, i32, i32
  }
}

</mosaic_0001>

<llo_original>
// kernel: tpu_custom_call.1
$region0: #{tpu_custom_call.1}
  #allocation0 [shape = 'u32[]', space=smem, size = 0x4, offset = 0x4, fixed_abs, tag = 'smem constant byte address 0x4 - core index']
  #allocation1 [shape = 'u32[144,128]{1,0:T(1,128)}', space=vmem, size = 0x12000, scoped, tag = 'internal scratch']
  #allocation2 [shape = 'f32[1,8,32]{2,1,0:T(8,128)}', space=vmem, size = 0x1000, scoped, tag = 'scratch operand']
  #allocation3 [shape = 'f32[1,3,32]{2,1,0:T(4,128)}', space=vmem, size = 0x800, scoped, tag = 'scratch operand']
  %s0 = inlined_call_operand.vmem [shape: f32[2,16,32], index: 0, kind: input, shape index: {}]
  %s1 = inlined_call_operand.vmem [shape: f32[1,32], index: 1, kind: input, shape index: {}]
  %s2 = inlined_call_operand.vmem [shape: f32[32,64], index: 2, kind: input, shape index: {}]
  %s3 = inlined_call_operand.hbm [shape: f32[4,32], index: 3, kind: input, shape index: {}]
  %s4 = inlined_call_operand.hbm [shape: f32[1,32], index: 4, kind: input, shape index: {}]
  %s5 = inlined_call_operand.vmem [shape: f32[32,48], index: 5, kind: input, shape index: {}]
  %s6 = inlined_call_operand.vmem [shape: f32[1,48], index: 6, kind: input, shape index: {}]
  %s7 = inlined_call_operand.vmem [shape: f32[8,32], index: 7, kind: input, shape index: {}]
  %s8 = inlined_call_operand.hbm [shape: f32[32,32], index: 8, kind: input, shape index: {}]
  %s9 = inlined_call_operand.vmem [shape: f32[1,32], index: 9, kind: input, shape index: {}]
  %s10 = inlined_call_operand.hbm [shape: f32[32,128], index: 10, kind: input, shape index: {}]
  %s11 = inlined_call_operand.vmem [shape: f32[64,32], index: 11, kind: input, shape index: {}]
  %s12 = inlined_call_operand.hbm [shape: f32[2,16,32], index: 12, kind: output, shape index: {}]
  %s13 = sld [smem:[#allocation0]]
  $region101: #{tpu_custom_call.1} parent=0
    _
  %s15 = ssub.s32 1, %s13
  %s16 = scalar_select 0, %s15, %s13
  $region1: #{tpu_custom_call.1} parent=0
    #allocation4 [shape = 'u8[2048]{0}', space=vmem, size = 0x800, scoped, tag = 'input window, operand 3, single buffered']
    #allocation5 [shape = 's32[2]{0}', space=sflag, size = 0x8, scoped, tag = 'scoped memory for tpu_custom_call.1']
    #allocation6 [shape = 's32[2]{0}', space=sflag, size = 0x8, scoped, tag = 'scoped memory for tpu_custom_call.1']
    #allocation7 [shape = 'u8[512]{0}', space=vmem, size = 0x400, scoped, tag = 'input window, operand 4, single buffered']
    #allocation8 [shape = 's32[1]{0}', space=sflag, size = 0x4, scoped, tag = 'scoped memory for tpu_custom_call.1']
    #allocation9 [shape = 'u8[16384]{0}', space=vmem, size = 0x4000, scoped, tag = 'input window, operand 8, single buffered']
    #allocation10 [shape = 'u8[16384]{0}', space=vmem, size = 0x4000, scoped, tag = 'input window, operand 10, single buffered']
    #allocation11 [shape = 's32[1]{0}', space=sflag, size = 0x4, scoped, tag = 'scoped memory for tpu_custom_call.1']
    #allocation12 [shape = 'u8[16384]{0}', space=vmem, size = 0x4000, scoped, tag = 'output window, operand 0']
    %17 = vsyncpa [#allocation5], 0
    %18 = vsyncpa [#allocation8], 0
    %19 = vsyncpa [#allocation11], 0
    %20 = vsyncpa [#allocation6], 0
    %s21 = scalar_lea.sflag [#allocation6], 1
    %22 = vsyncpa %s21, 0
    loop: start=0, step=1, limit=4
    $region2: #{tpu_custom_call.1} parent=1 // loop_pre_header
      _
    $region3: #{tpu_custom_call.1} parent=1 // loop_header
      %s24 = sphi 0, %s28
      %p25 = scmp.ge.s32.totalorder %s24, 4
      %s31 = sphi 0, %s43
      %s32 = sphi 0, %s39
      %s33 = sphi 0, %s31
      %s34 = sphi 0, %s32
      %s35 = sphi 0, %s33
      %s36 = sphi 0, %s34
      %s48 = sphi 0, %s50
      %s51 = sphi 0, %s48
      %s52 = sphi 0, %s51
      %s68 = sphi 0, %s52
      %s72 = sphi 0, %s72
      %s74 = sphi 0, %s72
      %s75 = sphi 0, %s74
      %s89 = sphi 0, %s75
      %s93 = sphi 0, %s93
      %s95 = sphi 0, %s93
      %s96 = sphi 0, %s95
      %s110 = sphi 0, %s96
      %s114 = sphi 0, %s114
      %s116 = sphi 0, %s114
      %s117 = sphi 0, %s116
      %s131 = sphi 0, %s117
      %s135 = sphi 0, %s135
      %s137 = sphi 0, %s135
      %s138 = sphi 0, %s137
      %s152 = sphi 0, %s138
      %s156 = sphi 0, %s156
      %s158 = sphi 0, %s156
      %s159 = sphi 0, %s158
      %s173 = sphi 0, %s159
      %s177 = sphi 0, %s177
      %s179 = sphi 0, %s177
      %s180 = sphi 0, %s179
      %s194 = sphi 0, %s180
      %s198 = sphi 0, %s198
      %s200 = sphi 0, %s198
      %s201 = sphi 0, %s200
      %s215 = sphi 0, %s201
      %s219 = sphi 0, %s219
      %s221 = sphi 0, %s219
      %s222 = sphi 0, %s221
      %s236 = sphi 0, %s222
      %s240 = sphi 0, %s240
      %s242 = sphi 0, %s240
      %s243 = sphi 0, %s242
      %s257 = sphi 0, %s243
      %s261 = sphi 0, %s261
      %s263 = sphi 0, %s261
      %s264 = sphi 0, %s263
      %s278 = sphi 0, %s264
      %s282 = sphi 0, %s282
      %s284 = sphi 0, %s282
      %s285 = sphi 0, %s284
      %s299 = sphi 0, %s285
      %s307 = sphi 0, %s309
      %s310 = sphi 0, %s307
      %s311 = sphi 0, %s310
      %s327 = sphi 0, %s311
    $region4: #{tpu_custom_call.1} parent=1 // loop_header_branch
      %27 = sbr.rel (%p25) target = $region8
    $region5: #{tpu_custom_call.1} parent=1 // loop_body
      %s29 = ssub.s32 %s24, 1
      %s30 = ssub.s32 %s24, 2
      %s37 = sadd.s32 1, %s32
      %p38 = scmp.ge.s32.totalorder %s37, 1
      %s39 = scalar_select %p38, 0, %s37
      %s40 = sadd.s32 1, %s31
      %s41 = scalar_select %p38, %s40, %s31
      %p42 = scmp.ge.s32.totalorder %s41, 2
      %s43 = scalar_select %p42, 0, %s41
      %s44 = ssub.s32 %s31, %s43
      %s45 = ssub.s32 %s32, %s39
      %s46 = sor.u32 %s44, %s45
      %p47 = scmp.eq.s32.totalorder %s46, 0
      %s49 = sadd.s32 %s48, 1
      %s50 = scalar_select %p47, %s48, %s49
      %p53 = pneg %p47
      %p54 = scmp.eq.s32.totalorder %s24, 1
      %p55 = por %p53, %p54
      %p56 = scmp.ne.s32.totalorder %s48, %s51
      %p57 = scmp.eq.s32.totalorder %s24, 0
      %p58 = por %p56, %p57
      %p59 = scmp.ne.s32.totalorder %s48, %s51
      %p60 = scmp.eq.s32.totalorder %s29, 1
      %p61 = por %p59, %p60
      %p62 = scmp.ne.s32.totalorder %s51, %s52
      %p63 = scmp.eq.s32.totalorder %s29, 0
      %p64 = por %p62, %p63
      %p65 = scmp.ne.s32.totalorder %s51, %s52
      %p66 = scmp.eq.s32.totalorder %s30, 1
      %p67 = por %p65, %p66
      %p69 = scmp.ne.s32.totalorder %s52, %s68
      %p70 = scmp.eq.s32.totalorder %s30, 0
      %p71 = por %p69, %p70
      %s73 = sadd.s32 %s72, 1
      %p76 = scmp.eq.s32.totalorder %s24, 1
      %p77 = scmp.ne.s32.totalorder %s72, %s74
      %p78 = scmp.eq.s32.totalorder %s24, 0
      %p79 = por %p77, %p78
      %p80 = scmp.ne.s32.totalorder %s72, %s74
      %p81 = scmp.eq.s32.totalorder %s29, 1
      %p82 = por %p80, %p81
      %p83 = scmp.ne.s32.totalorder %s74, %s75
      %p84 = scmp.eq.s32.totalorder %s29, 0
      %p85 = por %p83, %p84
      %p86 = scmp.ne.s32.totalorder %s74, %s75
      %p87 = scmp.eq.s32.totalorder %s30, 1
      %p88 = por %p86, %p87
      %p90 = scmp.ne.s32.totalorder %s75, %s89
      %p91 = scmp.eq.s32.totalorder %s30, 0
      %p92 = por %p90, %p91
      %s94 = sadd.s32 %s93, 1
      %p97 = scmp.eq.s32.totalorder %s24, 1
      %p98 = scmp.ne.s32.totalorder %s93, %s95
      %p99 = scmp.eq.s32.totalorder %s24, 0
      %p100 = por %p98, %p99
      %p101 = scmp.ne.s32.totalorder %s93, %s95
      %p102 = scmp.eq.s32.totalorder %s29, 1
      %p103 = por %p101, %p102
      %p104 = scmp.ne.s32.totalorder %s95, %s96
      %p105 = scmp.eq.s32.totalorder %s29, 0
      %p106 = por %p104, %p105
      %p107 = scmp.ne.s32.totalorder %s95, %s96
      %p108 = scmp.eq.s32.totalorder %s30, 1
      %p109 = por %p107, %p108
      %p111 = scmp.ne.s32.totalorder %s96, %s110
      %p112 = scmp.eq.s32.totalorder %s30, 0
      %p113 = por %p111, %p112
      %s115 = sadd.s32 %s114, 1
      %p118 = scmp.eq.s32.totalorder %s24, 1
      %p119 = scmp.ne.s32.totalorder %s114, %s116
      %p120 = scmp.eq.s32.totalorder %s24, 0
      %p121 = por %p119, %p120
      %p122 = scmp.ne.s32.totalorder %s114, %s116
      %p123 = scmp.eq.s32.totalorder %s29, 1
      %p124 = por %p122, %p123
      %p125 = scmp.ne.s32.totalorder %s116, %s117
      %p126 = scmp.eq.s32.totalorder %s29, 0
      %p127 = por %p125, %p126
      %p128 = scmp.ne.s32.totalorder %s116, %s117
      %p129 = scmp.eq.s32.totalorder %s30, 1
      %p130 = por %p128, %p129
      %p132 = scmp.ne.s32.totalorder %s117, %s131
      %p133 = scmp.eq.s32.totalorder %s30, 0
      %p134 = por %p132, %p133
      %s136 = sadd.s32 %s135, 1
      %p139 = scmp.eq.s32.totalorder %s24, 1
      %p140 = scmp.ne.s32.totalorder %s135, %s137
      %p141 = scmp.eq.s32.totalorder %s24, 0
      %p142 = por %p140, %p141
      %p143 = scmp.ne.s32.totalorder %s135, %s137
      %p144 = scmp.eq.s32.totalorder %s29, 1
      %p145 = por %p143, %p144
      %p146 = scmp.ne.s32.totalorder %s137, %s138
      %p147 = scmp.eq.s32.totalorder %s29, 0
      %p148 = por %p146, %p147
      %p149 = scmp.ne.s32.totalorder %s137, %s138
      %p150 = scmp.eq.s32.totalorder %s30, 1
      %p151 = por %p149, %p150
      %p153 = scmp.ne.s32.totalorder %s138, %s152
      %p154 = scmp.eq.s32.totalorder %s30, 0
      %p155 = por %p153, %p154
      %s157 = sadd.s32 %s156, 1
      %p160 = scmp.eq.s32.totalorder %s24, 1
      %p161 = scmp.ne.s32.totalorder %s156, %s158
      %p162 = scmp.eq.s32.totalorder %s24, 0
      %p163 = por %p161, %p162
      %p164 = scmp.ne.s32.totalorder %s156, %s158
      %p165 = scmp.eq.s32.totalorder %s29, 1
      %p166 = por %p164, %p165
      %p167 = scmp.ne.s32.totalorder %s158, %s159
      %p168 = scmp.eq.s32.totalorder %s29, 0
      %p169 = por %p167, %p168
      %p170 = scmp.ne.s32.totalorder %s158, %s159
      %p171 = scmp.eq.s32.totalorder %s30, 1
      %p172 = por %p170, %p171
      %p174 = scmp.ne.s32.totalorder %s159, %s173
      %p175 = scmp.eq.s32.totalorder %s30, 0
      %p176 = por %p174, %p175
      %s178 = sadd.s32 %s177, 1
      %p181 = scmp.eq.s32.totalorder %s24, 1
      %p182 = scmp.ne.s32.totalorder %s177, %s179
      %p183 = scmp.eq.s32.totalorder %s24, 0
      %p184 = por %p182, %p183
      %p185 = scmp.ne.s32.totalorder %s177, %s179
      %p186 = scmp.eq.s32.totalorder %s29, 1
      %p187 = por %p185, %p186
      %p188 = scmp.ne.s32.totalorder %s179, %s180
      %p189 = scmp.eq.s32.totalorder %s29, 0
      %p190 = por %p188, %p189
      %p191 = scmp.ne.s32.totalorder %s179, %s180
      %p192 = scmp.eq.s32.totalorder %s30, 1
      %p193 = por %p191, %p192
      %p195 = scmp.ne.s32.totalorder %s180, %s194
      %p196 = scmp.eq.s32.totalorder %s30, 0
      %p197 = por %p195, %p196
      %s199 = sadd.s32 %s198, 1
      %p202 = scmp.eq.s32.totalorder %s24, 1
      %p203 = scmp.ne.s32.totalorder %s198, %s200
      %p204 = scmp.eq.s32.totalorder %s24, 0
      %p205 = por %p203, %p204
      %p206 = scmp.ne.s32.totalorder %s198, %s200
      %p207 = scmp.eq.s32.totalorder %s29, 1
      %p208 = por %p206, %p207
      %p209 = scmp.ne.s32.totalorder %s200, %s201
      %p210 = scmp.eq.s32.totalorder %s29, 0
      %p211 = por %p209, %p210
      %p212 = scmp.ne.s32.totalorder %s200, %s201
      %p213 = scmp.eq.s32.totalorder %s30, 1
      %p214 = por %p212, %p213
      %p216 = scmp.ne.s32.totalorder %s201, %s215
      %p217 = scmp.eq.s32.totalorder %s30, 0
      %p218 = por %p216, %p217
      %s220 = sadd.s32 %s219, 1
      %p223 = scmp.eq.s32.totalorder %s24, 1
      %p224 = scmp.ne.s32.totalorder %s219, %s221
      %p225 = scmp.eq.s32.totalorder %s24, 0
      %p226 = por %p224, %p225
      %p227 = scmp.ne.s32.totalorder %s219, %s221
      %p228 = scmp.eq.s32.totalorder %s29, 1
      %p229 = por %p227, %p228
      %p230 = scmp.ne.s32.totalorder %s221, %s222
      %p231 = scmp.eq.s32.totalorder %s29, 0
      %p232 = por %p230, %p231
      %p233 = scmp.ne.s32.totalorder %s221, %s222
      %p234 = scmp.eq.s32.totalorder %s30, 1
      %p235 = por %p233, %p234
      %p237 = scmp.ne.s32.totalorder %s222, %s236
      %p238 = scmp.eq.s32.totalorder %s30, 0
      %p239 = por %p237, %p238
      %s241 = sadd.s32 %s240, 1
      %p244 = scmp.eq.s32.totalorder %s24, 1
      %p245 = scmp.ne.s32.totalorder %s240, %s242
      %p246 = scmp.eq.s32.totalorder %s24, 0
      %p247 = por %p245, %p246
      %p248 = scmp.ne.s32.totalorder %s240, %s242
      %p249 = scmp.eq.s32.totalorder %s29, 1
      %p250 = por %p248, %p249
      %p251 = scmp.ne.s32.totalorder %s242, %s243
      %p252 = scmp.eq.s32.totalorder %s29, 0
      %p253 = por %p251, %p252
      %p254 = scmp.ne.s32.totalorder %s242, %s243
      %p255 = scmp.eq.s32.totalorder %s30, 1
      %p256 = por %p254, %p255
      %p258 = scmp.ne.s32.totalorder %s243, %s257
      %p259 = scmp.eq.s32.totalorder %s30, 0
      %p260 = por %p258, %p259
      %s262 = sadd.s32 %s261, 1
      %p265 = scmp.eq.s32.totalorder %s24, 1
      %p266 = scmp.ne.s32.totalorder %s261, %s263
      %p267 = scmp.eq.s32.totalorder %s24, 0
      %p268 = por %p266, %p267
      %p269 = scmp.ne.s32.totalorder %s261, %s263
      %p270 = scmp.eq.s32.totalorder %s29, 1
      %p271 = por %p269, %p270
      %p272 = scmp.ne.s32.totalorder %s263, %s264
      %p273 = scmp.eq.s32.totalorder %s29, 0
      %p274 = por %p272, %p273
      %p275 = scmp.ne.s32.totalorder %s263, %s264
      %p276 = scmp.eq.s32.totalorder %s30, 1
      %p277 = por %p275, %p276
      %p279 = scmp.ne.s32.totalorder %s264, %s278
      %p280 = scmp.eq.s32.totalorder %s30, 0
      %p281 = por %p279, %p280
      %s283 = sadd.s32 %s282, 1
      %p286 = scmp.eq.s32.totalorder %s24, 1
      %p287 = scmp.ne.s32.totalorder %s282, %s284
      %p288 = scmp.eq.s32.totalorder %s24, 0
      %p289 = por %p287, %p288
      %p290 = scmp.ne.s32.totalorder %s282, %s284
      %p291 = scmp.eq.s32.totalorder %s29, 1
      %p292 = por %p290, %p291
      %p293 = scmp.ne.s32.totalorder %s284, %s285
      %p294 = scmp.eq.s32.totalorder %s29, 0
      %p295 = por %p293, %p294
      %p296 = scmp.ne.s32.totalorder %s284, %s285
      %p297 = scmp.eq.s32.totalorder %s30, 1
      %p298 = por %p296, %p297
      %p300 = scmp.ne.s32.totalorder %s285, %s299
      %p301 = scmp.eq.s32.totalorder %s30, 0
      %p302 = por %p300, %p301
      %s303 = ssub.s32 %s31, %s43
      %s304 = ssub.s32 %s32, %s39
      %s305 = sor.u32 %s303, %s304
      %p306 = scmp.eq.s32.totalorder %s305, 0
      %s308 = sadd.s32 %s307, 1
      %s309 = scalar_select %p306, %s307, %s308
      %p312 = pneg %p306
      %p313 = scmp.eq.s32.totalorder %s24, 1
      %p314 = por %p312, %p313
      %p315 = scmp.ne.s32.totalorder %s307, %s310
      %p316 = scmp.eq.s32.totalorder %s24, 0
      %p317 = por %p315, %p316
      %p318 = scmp.ne.s32.totalorder %s307, %s310
      %p319 = scmp.eq.s32.totalorder %s29, 1
      %p320 = por %p318, %p319
      %p321 = scmp.ne.s32.totalorder %s310, %s311
      %p322 = scmp.eq.s32.totalorder %s29, 0
      %p323 = por %p321, %p322
      %p324 = scmp.ne.s32.totalorder %s310, %s311
      %p325 = scmp.eq.s32.totalorder %s30, 1
      %p326 = por %p324, %p325
      %p328 = scmp.ne.s32.totalorder %s311, %s327
      %p329 = scmp.eq.s32.totalorder %s30, 0
      %p330 = por %p328, %p329
      %p331 = scmp.le.s32.totalorder 1, %s24
      %p332 = scmp.lt.s32.totalorder %s24, 3
      %p333 = pnand %p331, %p332
      %p334 = pneg %p333
      // Predicated region
      $region9: #{tpu_custom_call.1} parent=5 // pred_check
        _
      $region10: #{tpu_custom_call.1} parent=5 // pred_check_branch
        %336 = sbr.rel (%p333) target = $region12
      $region11: #{tpu_custom_call.1} parent=5 // pred_region
        %s337 = ssub.s32 %s24, 1
        // Predicated region
        $region13: #{tpu_custom_call.1} parent=11 // pred_check
          %p338 = pneg %p85
        $region14: #{tpu_custom_call.1} parent=11 // pred_check_branch
          %340 = sbr.rel (%p338) target = $region16
        $region15: #{tpu_custom_call.1} parent=11 // pred_region
          _
        $region16: #{tpu_custom_call.1} parent=11 // pred_fallthru
          _
        // Predicated region
        $region17: #{tpu_custom_call.1} parent=11 // pred_check
          %p341 = pneg %p106
        $region18: #{tpu_custom_call.1} parent=11 // pred_check_branch
          %343 = sbr.rel (%p341) target = $region20
        $region19: #{tpu_custom_call.1} parent=11 // pred_region
          _
        $region20: #{tpu_custom_call.1} parent=11 // pred_fallthru
          _
        // Predicated region
        $region21: #{tpu_custom_call.1} parent=11 // pred_check
          %p344 = pneg %p127
        $region22: #{tpu_custom_call.1} parent=11 // pred_check_branch
          %346 = sbr.rel (%p344) target = $region24
        $region23: #{tpu_custom_call.1} parent=11 // pred_region
          %s348 = ssub.s32 64, 64
          %349 = vsyncadd [#allocation5], %s348
          %s351 = sshll.u32 [#allocation4], 4
          %s352 = int_to_ptr.vmem [resolvable:$true] %s351
          %354 = dma.hbm_to_vmem [thread:$0]  %s3, 64, %s352, [#allocation5]
        $region24: #{tpu_custom_call.1} parent=11 // pred_fallthru
          _
        // Predicated region
        $region25: #{tpu_custom_call.1} parent=11 // pred_check
          %p355 = pneg %p148
        $region26: #{tpu_custom_call.1} parent=11 // pred_check_branch
          %357 = sbr.rel (%p355) target = $region28
        $region27: #{tpu_custom_call.1} parent=11 // pred_region
          %s359 = ssub.s32 16, 16
          %360 = vsyncadd [#allocation8], %s359
          %s362 = sshll.u32 [#allocation7], 4
          %s363 = int_to_ptr.vmem [resolvable:$true] %s362
          %365 = dma.hbm_to_vmem [thread:$0]  %s4, 16, %s363, [#allocation8]
        $region28: #{tpu_custom_call.1} parent=11 // pred_fallthru
          _
        // Predicated region
        $region29: #{tpu_custom_call.1} parent=11 // pred_check
          %p366 = pneg %p169
        $region30: #{tpu_custom_call.1} parent=11 // pred_check_branch
          %368 = sbr.rel (%p366) target = $region32
        $region31: #{tpu_custom_call.1} parent=11 // pred_region
          _
        $region32: #{tpu_custom_call.1} parent=11 // pred_fallthru
          _
        // Predicated region
        $region33: #{tpu_custom_call.1} parent=11 // pred_check
          %p369 = pneg %p190
        $region34: #{tpu_custom_call.1} parent=11 // pred_check_branch
          %371 = sbr.rel (%p369) target = $region36
        $region35: #{tpu_custom_call.1} parent=11 // pred_region
          _
        $region36: #{tpu_custom_call.1} parent=11 // pred_fallthru
          _
        // Predicated region
        $region37: #{tpu_custom_call.1} parent=11 // pred_check
          %p372 = pneg %p211
        $region38: #{tpu_custom_call.1} parent=11 // pred_check_branch
          %374 = sbr.rel (%p372) target = $region40
        $region39: #{tpu_custom_call.1} parent=11 // pred_region
          _
        $region40: #{tpu_custom_call.1} parent=11 // pred_fallthru
          _
        // Predicated region
        $region41: #{tpu_custom_call.1} parent=11 // pred_check
          %p375 = pneg %p232
        $region42: #{tpu_custom_call.1} parent=11 // pred_check_branch
          %377 = sbr.rel (%p375) target = $region44
        $region43: #{tpu_custom_call.1} parent=11 // pred_region
          %s379 = ssub.s32 512, 512
          %380 = vsyncadd [#allocation8], %s379
          %s381 = sshll.u32 [#allocation9], 4
          %s382 = int_to_ptr.vmem [resolvable:$true] %s381
          %387 = dma.hbm_to_vmem [thread:$0]  %s8, 512, %s382, [#allocation8], 128, 128, 8
        $region44: #{tpu_custom_call.1} parent=11 // pred_fallthru
          _
        // Predicated region
        $region45: #{tpu_custom_call.1} parent=11 // pred_check
          %p388 = pneg %p253
        $region46: #{tpu_custom_call.1} parent=11 // pred_check_branch
          %390 = sbr.rel (%p388) target = $region48
        $region47: #{tpu_custom_call.1} parent=11 // pred_region
          _
        $region48: #{tpu_custom_call.1} parent=11 // pred_fallthru
          _
        // Predicated region
        $region49: #{tpu_custom_call.1} parent=11 // pred_check
          %p391 = pneg %p274
        $region50: #{tpu_custom_call.1} parent=11 // pred_check_branch
          %393 = sbr.rel (%p391) target = $region52
        $region51: #{tpu_custom_call.1} parent=11 // pred_region
          %s395 = ssub.s32 512, 512
          %396 = vsyncadd [#allocation11], %s395
          %s397 = sshll.u32 [#allocation10], 4
          %s398 = int_to_ptr.vmem [resolvable:$true] %s397
          %403 = dma.hbm_to_vmem [thread:$0]  %s10, 512, %s398, [#allocation11], 128, 128, 8
        $region52: #{tpu_custom_call.1} parent=11 // pred_fallthru
          _
        // Predicated region
        $region53: #{tpu_custom_call.1} parent=11 // pred_check
          %p404 = pneg %p295
        $region54: #{tpu_custom_call.1} parent=11 // pred_check_branch
          %406 = sbr.rel (%p404) target = $region56
        $region55: #{tpu_custom_call.1} parent=11 // pred_region
          _
        $region56: #{tpu_custom_call.1} parent=11 // pred_fallthru
          _
      $region12: #{tpu_custom_call.1} parent=5 // pred_fallthru
        _
      %p407 = scmp.lt.s32.totalorder %s24, 2
      // Predicated region
      $region57: #{tpu_custom_call.1} parent=5 // pred_check
        %p408 = pneg %p407
      $region58: #{tpu_custom_call.1} parent=5 // pred_check_branch
        %410 = sbr.rel (%p408) target = $region60
      $region59: #{tpu_custom_call.1} parent=5 // pred_region
        // Predicated region
        $region61: #{tpu_custom_call.1} parent=59 // pred_check
          %p411 = pneg %p58
        $region62: #{tpu_custom_call.1} parent=59 // pred_check_branch
          %413 = sbr.rel (%p411) target = $region64
        $region63: #{tpu_custom_call.1} parent=59 // pred_region
          %s414 = smul.u32 2, %s32
          %p415 = scmp.lt.s32.totalorder %s31, 1
          %s416 = scalar_select %p415, %s31, 1
          %p417 = scmp.lt.s32.totalorder %s414, 1
          %s418 = scalar_select %p417, %s414, 1
          %s419 = smul.addr %s416, 2
          %s420 = sadd.s32 %s418, %s419
          %s421 = smul.addr %s420, 8
          %s422 = scalar_lea.vmem %s0, %s421
          %s423 = smul.u32 2, %s32
        $region64: #{tpu_custom_call.1} parent=59 // pred_fallthru
          _
      $region60: #{tpu_custom_call.1} parent=5 // pred_fallthru
        _
      %p424 = scmp.le.s32.totalorder 1, %s24
      %p425 = scmp.lt.s32.totalorder %s24, 3
      %p426 = pnand %p424, %p425
      %p427 = pneg %p426
      // Predicated region
      $region65: #{tpu_custom_call.1} parent=5 // pred_check
        _
      $region66: #{tpu_custom_call.1} parent=5 // pred_check_branch
        %429 = sbr.rel (%p426) target = $region68
      $region67: #{tpu_custom_call.1} parent=5 // pred_region
        %s430 = ssub.s32 %s24, 1
        // Predicated region
        $region69: #{tpu_custom_call.1} parent=67 // pred_check
          %p431 = pneg %p127
        $region70: #{tpu_custom_call.1} parent=67 // pred_check_branch
          %433 = sbr.rel (%p431) target = $region72
        $region71: #{tpu_custom_call.1} parent=67 // pred_region
          %434 = dma.done [#allocation5], 64
        $region72: #{tpu_custom_call.1} parent=67 // pred_fallthru
          _
        // Predicated region
        $region73: #{tpu_custom_call.1} parent=67 // pred_check
          %p435 = pneg %p148
        $region74: #{tpu_custom_call.1} parent=67 // pred_check_branch
          %437 = sbr.rel (%p435) target = $region76
        $region75: #{tpu_custom_call.1} parent=67 // pred_region
          %438 = dma.done [#allocation8], 16
        $region76: #{tpu_custom_call.1} parent=67 // pred_fallthru
          _
        // Predicated region
        $region77: #{tpu_custom_call.1} parent=67 // pred_check
          %p439 = pneg %p232
        $region78: #{tpu_custom_call.1} parent=67 // pred_check_branch
          %441 = sbr.rel (%p439) target = $region80
        $region79: #{tpu_custom_call.1} parent=67 // pred_region
          %442 = dma.done [#allocation8], 512
        $region80: #{tpu_custom_call.1} parent=67 // pred_fallthru
          _
        // Predicated region
        $region81: #{tpu_custom_call.1} parent=67 // pred_check
          %p443 = pneg %p274
        $region82: #{tpu_custom_call.1} parent=67 // pred_check_branch
          %445 = sbr.rel (%p443) target = $region84
        $region83: #{tpu_custom_call.1} parent=67 // pred_region
          %446 = dma.done [#allocation11], 512
        $region84: #{tpu_custom_call.1} parent=67 // pred_fallthru
          _
        %s447 = smul.u32 2, %s34
        %p448 = scmp.lt.s32.totalorder %s33, 1
        %s449 = scalar_select %p448, %s33, 1
        %p450 = scmp.lt.s32.totalorder %s447, 1
        %s451 = scalar_select %p450, %s447, 1
        %s452 = smul.addr %s449, 2
        %s453 = sadd.s32 %s451, %s452
        %s454 = smul.addr %s453, 8
        %s455 = scalar_lea.vmem %s0, %s454
        %p456 = pneg %p64
        %p457 = pneg %p61
        %p458 = pneg %p85
        %p459 = pneg %p82
        %p460 = pneg %p106
        %p461 = pneg %p103
        %p462 = pneg %p127
        %p463 = pneg %p124
        %p464 = pneg %p148
        %p465 = pneg %p145
        %p466 = pneg %p169
        %p467 = pneg %p166
        %p468 = pneg %p190
        %p469 = pneg %p187
        %p470 = pneg %p211
        %p471 = pneg %p208
        %p472 = pneg %p232
        %p473 = pneg %p229
        %p474 = pneg %p253
        %p475 = pneg %p250
        %p476 = pneg %p274
        %p477 = pneg %p271
        %p478 = pneg %p295
        %p479 = pneg %p292
        %p480 = pneg %p323
        %p481 = pneg %p320
        %s482 = sand.u32 %s310, 1
        %s483 = scalar_lea.sflag [#allocation6], %s482
        %s484 = sand.u32 %s310, 1
        %s485 = smul.addr %s484, 16
        %s486 = scalar_lea.vmem [#allocation12], %s485
        %s487 = smul.u32 2, %s34
        %p488 = scmp.lt.s32.totalorder %s33, 1
        %s489 = scalar_select %p488, %s33, 1
        %p490 = scmp.lt.s32.totalorder %s487, 1
        %s491 = scalar_select %p490, %s487, 1
        %s492 = smul.addr %s489, 2
        %s493 = sadd.s32 %s491, %s492
        %s494 = smul.addr %s493, 8
        %s495 = scalar_lea.vmem %s0, %s494
        %s496 = smul.u32 2, %s34
        %s497 = smul.u32 2, %s34
        %p498 = scmp.eq.s32.totalorder %s34, 0
        // Predicated region
        $region85: #{tpu_custom_call.1} parent=67 // pred_check
          %p499 = pneg %p498
        $region86: #{tpu_custom_call.1} parent=67 // pred_check_branch
          %501 = sbr.rel (%p499) target = $region88
        $region87: #{tpu_custom_call.1} parent=67 // pred_region
          %vm502 = vcmask 261120
          %503 = vst.msk [vmem:[#allocation2] sm:$0xff] %vm502, 0.0
          %vm504 = vcmask 256000
          %505 = vst.msk [vmem:[#allocation3] sm:$0x7] %vm504, 0.0
        $region88: #{tpu_custom_call.1} parent=67 // pred_fallthru
          _
        %v506 = vld [vmem:[%s495] sm:$0xff]
        %v507 = vld [vmem:[%s495 + $0x8] sm:$0xff]
        %v508 = vmul.f32 %v506, %v506
        %v509 = vmul.f32 %v507, %v507
        %vm510 = vcmask 261120
        %v511 = vsel %vm510, %v508, 0.0
        %512 = vadd.xlane.f32.xlu0 %v511
        %v513 = vpop.xlane.xlu0 %512
        %v514 = vsel %vm510, %v509, 0.0
        %515 = vadd.xlane.f32.xlu0 %v514
        %v516 = vpop.xlane.xlu0 %515
        %v517 = vadd.f32 %v513, 1e-12
        %v518 = vadd.f32 %v516, 1e-12
        %v519 = vrsqrt.pop %v517
        %v520 = vrsqrt.pop %v518
        %v521 = vmul.f32 %v506, %v519
        %v522 = vmul.f32 %v507, %v520
        %v523 = vld [vmem:[%s1] sm:$0x1]
        %v525 = vlaneseq
        %v526 = vshrl.u32 %v525, 7
        %v527 = vsub.s32 0, %v526
        %v528 = vrot.slane %v523, %v527
        %v530 = vmul.f32 %v521, %v528
        %v531 = vmul.f32 %v522, %v528
        %v532 = vld [vmem:[%s2] sm:$0xff]
        %v533 = vld [vmem:[%s2 + $0x8] sm:$0xff]
        %v534 = vld [vmem:[%s2 + $0x10] sm:$0xff]
        %v535 = vld [vmem:[%s2 + $0x18] sm:$0xff]
        %v537 = vsel %vm510, %v530, 0
        %v540 = vsel %vm510, %v531, 0
        %542 = vmatprep.subr.mxu0 0.0
        %543 = vmatpush1.msra.mxu0 0.0
        %544 = vmatprep.subr.mxu0 0.0
        %545 = vmatpush1.msra.mxu0 0.0
        %546 = vmatprep.subr.mxu0 0.0
        %547 = vmatpush1.msra.mxu0 0.0
        %548 = vmatprep.subr.mxu0 0.0
        %549 = vmatpush1.msra.mxu0 0.0
        %550 = vmatprep.subr.mxu0 0.0
        %551 = vmatpush1.msra.mxu0 0.0
        %552 = vmatprep.subr.mxu0 0.0
        %553 = vmatpush1.msra.mxu0 0.0
        %554 = vmatprep.subr.mxu0 0.0
        %555 = vmatpush1.msra.mxu0 0.0
        %556 = vmatprep.subr.mxu0 0.0
        %557 = vmatpush1.msra.mxu0 0.0
        %558 = vmatprep.subr.mxu0 0.0
        %559 = vmatpush1.msra.mxu0 0.0
        %560 = vmatprep.subr.mxu0 0.0
        %561 = vmatpush1.msra.mxu0 0.0
        %562 = vmatprep.subr.mxu0 0.0
        %563 = vmatpush1.msra.mxu0 0.0
        %564 = vmatprep.subr.mxu0 0.0
        %565 = vmatpush1.msra.mxu0 0.0
        %566 = vmatprep.subr.mxu0 0.0
        %567 = vmatpush1.msra.mxu0 %v535
        %568 = vmatprep.subr.mxu0 0.0
        %569 = vmatpush1.msra.mxu0 %v534
        %570 = vmatprep.subr.mxu0 0.0
        %571 = vmatpush1.msra.mxu0 %v533
        %572 = vmatprep.subr.mxu0 0.0
        %573 = vmatpush1.msra.mxu0 %v532
        %574 = vmatprep.subr.mxu0 0.0
        %575 = vmatpush2.msra.mxu0 0.0
        %576 = vmatprep.subr.mxu0 0.0
        %577 = vmatpush2.msra.mxu0 0.0
        %578 = vmatprep.subr.mxu0 0.0
        %579 = vmatpush2.msra.mxu0 0.0
        %580 = vmatprep.subr.mxu0 0.0
        %581 = vmatpush2.msra.mxu0 0.0
        %582 = vmatprep.subr.mxu0 0.0
        %583 = vmatpush2.msra.mxu0 0.0
        %584 = vmatprep.subr.mxu0 0.0
        %585 = vmatpush2.msra.mxu0 0.0
        %586 = vmatprep.subr.mxu0 0.0
        %587 = vmatpush2.msra.mxu0 0.0
        %588 = vmatprep.subr.mxu0 0.0
        %589 = vmatpush2.msra.mxu0 0.0
        %590 = vmatprep.subr.mxu0 0.0
        %591 = vmatpush2.msra.mxu0 0.0
        %592 = vmatprep.subr.mxu0 0.0
        %593 = vmatpush2.msra.mxu0 0.0
        %594 = vmatprep.subr.mxu0 0.0
        %595 = vmatpush2.msra.mxu0 0.0
        %596 = vmatprep.subr.mxu0 0.0
        %597 = vmatpush2.msra.mxu0 0.0
        %598 = vmatprep.subr.mxu0 0.0
        %599 = vmatpush2.msra.mxu0 0.0
        %600 = vmatprep.subr.mxu0 0.0
        %601 = vmatpush2.msra.mxu0 0.0
        %602 = vmatprep.subr.mxu0 0.0
        %603 = vmatpush2.msra.mxu0 0.0
        %604 = vmatprep.subr.mxu0 0.0
        %605 = vmatpush2.msra.mxu0 0.0
        %606 = vmatprep.mubr.f32.mxu0 0.0
        %607 = vmatmul.mubr.f32.gmra.mxu0 %v537
        %v608 = vpop.f32.mrf.mxu0
        %v609 = vadd.f32 0.0, %v608
        %v610 = vpop.f32.mrf.mxu0
        %611 = vmatprep.mubr.f32.mxu0 0.0
        %612 = vmatmul.mubr.f32.gmra.mxu0 %v540
        %v613 = vpop.f32.mrf.mxu0
        %v614 = vadd.f32 0.0, %v613
        %v615 = vpop.f32.mrf.mxu0
        %616 = vdwg.mxu0
        %v617 = vld [vmem:[#allocation3] sm:$0x7]
        %vm620 = vcmask 1042432
        %v621 = vrot.slane %v609, 5
        %v622 = vrot.slane %v614, 5
        %v623 = vsel %vm620, %v621, %v622
        %624 = vrot.lane.b32.xlu0 %v621, 96
        %v625 = vpop.permute.xlu0 %624
        %626 = vrot.lane.b32.xlu0 %v623, 96
        %v627 = vpop.permute.xlu0 %626
        %628 = vrot.lane.b32.xlu0 %v622, 96
        %v629 = vpop.permute.xlu0 %628
        %v633 = vsel %vm620, %v617, %v625
        %v634 = vld [vmem:[#allocation4] sm:$0x1]
        %v635 = vlaneseq
        %v636 = vshrl.u32 %v635, 7
        %v637 = vsub.s32 0, %v636
        %v638 = vrot.slane %v634, %v637
        %v639 = vmul.f32 %v638, %v633
        %v640 = vmul.f32 %v638, %v627
        %v641 = vadd.f32 %v639, 0.0
        %v642 = vadd.f32 %v640, 0.0
        %v643 = vld [vmem:[#allocation4 + $0x1] sm:$0x1]
        %v644 = vlaneseq
        %v645 = vshrl.u32 %v644, 7
        %v646 = vsub.s32 0, %v645
        %v647 = vrot.slane %v643, %v646
        %v648 = vmul.f32 %v647, %v633
        %v649 = vmul.f32 %v647, %v627
        %v650 = vmul.f32 %v647, %v629
        %vm654 = vcmask 1046528
        %v655 = vrot.slane %v648, 1
        %v656 = vrot.slane %v649, 1
        %v657 = vsel %vm654, %v655, %v656
        %v658 = vrot.slane %v650, 1
        %v659 = vsel %vm654, %v656, %v658
        %v662 = vadd.f32 %v641, %v657
        %v663 = vadd.f32 %v642, %v659
        %v664 = vld [vmem:[#allocation4 + $0x2] sm:$0x1]
        %v665 = vlaneseq
        %v666 = vshrl.u32 %v665, 7
        %v667 = vsub.s32 0, %v666
        %v668 = vrot.slane %v664, %v667
        %v669 = vmul.f32 %v668, %v633
        %v670 = vmul.f32 %v668, %v627
        %v671 = vmul.f32 %v668, %v629
        %vm675 = vcmask 1045504
        %v676 = vrot.slane %v669, 2
        %v677 = vrot.slane %v670, 2
        %v678 = vsel %vm675, %v676, %v677
        %v679 = vrot.slane %v671, 2
        %v680 = vsel %vm675, %v677, %v679
        %v683 = vadd.f32 %v662, %v678
        %v684 = vadd.f32 %v663, %v680
        %v685 = vld [vmem:[#allocation4 + $0x3] sm:$0x1]
        %v686 = vlaneseq
        %v687 = vshrl.u32 %v686, 7
        %v688 = vsub.s32 0, %v687
        %v689 = vrot.slane %v685, %v688
        %v690 = vmul.f32 %v689, %v633
        %v691 = vmul.f32 %v689, %v627
        %v692 = vmul.f32 %v689, %v629
        %vm696 = vcmask 1044480
        %v697 = vrot.slane %v690, 3
        %v698 = vrot.slane %v691, 3
        %v699 = vsel %vm696, %v697, %v698
        %v700 = vrot.slane %v692, 3
        %v701 = vsel %vm696, %v698, %v700
        %v704 = vadd.f32 %v683, %v699
        %v705 = vadd.f32 %v684, %v701
        %706 = vrot.lane.b32.xlu0 %v614, 96
        %v707 = vpop.permute.xlu0 %706
        %vm709 = vcmask 261125
        %710 = vst.msk [vmem:[#allocation3 - $0x5] sm:$0xe0] %vm709, %v707
        %v711 = vld [vmem:[#allocation7] sm:$0x1]
        %v713 = vlaneseq
        %v714 = vshrl.u32 %v713, 7
        %v715 = vsub.s32 0, %v714
        %v716 = vrot.slane %v711, %v715
        %v718 = vadd.f32 %v704, %v716
        %v719 = vadd.f32 %v705, %v716
        %v720 = vld [vmem:[%s5] sm:$0xff]
        %v721 = vld [vmem:[%s5 + $0x8] sm:$0xff]
        %v722 = vld [vmem:[%s5 + $0x10] sm:$0xff]
        %v723 = vld [vmem:[%s5 + $0x18] sm:$0xff]
        %v724 = vld [vmem:[%s6] sm:$0x1]
        %v726 = vlaneseq
        %v727 = vshrl.u32 %v726, 7
        %v728 = vsub.s32 0, %v727
        %v729 = vrot.slane %v724, %v728
        %v732 = vsel %vm510, %v718, 0
        %v735 = vsel %vm510, %v719, 0
        %737 = vmatprep.subr.mxu0 0.0
        %738 = vmatpush1.msra.mxu0 0.0
        %739 = vmatprep.subr.mxu0 0.0
        %740 = vmatpush1.msra.mxu0 0.0
        %741 = vmatprep.subr.mxu0 0.0
        %742 = vmatpush1.msra.mxu0 0.0
        %743 = vmatprep.subr.mxu0 0.0
        %744 = vmatpush1.msra.mxu0 0.0
        %745 = vmatprep.subr.mxu0 0.0
        %746 = vmatpush1.msra.mxu0 0.0
        %747 = vmatprep.subr.mxu0 0.0
        %748 = vmatpush1.msra.mxu0 0.0
        %749 = vmatprep.subr.mxu0 0.0
        %750 = vmatpush1.msra.mxu0 0.0
        %751 = vmatprep.subr.mxu0 0.0
        %752 = vmatpush1.msra.mxu0 0.0
        %753 = vmatprep.subr.mxu0 0.0
        %754 = vmatpush1.msra.mxu0 0.0
        %755 = vmatprep.subr.mxu0 0.0
        %756 = vmatpush1.msra.mxu0 0.0
        %757 = vmatprep.subr.mxu0 0.0
        %758 = vmatpush1.msra.mxu0 0.0
        %759 = vmatprep.subr.mxu0 0.0
        %760 = vmatpush1.msra.mxu0 0.0
        %761 = vmatprep.subr.mxu0 0.0
        %762 = vmatpush1.msra.mxu0 %v723
        %763 = vmatprep.subr.mxu0 0.0
        %764 = vmatpush1.msra.mxu0 %v722
        %765 = vmatprep.subr.mxu0 0.0
        %766 = vmatpush1.msra.mxu0 %v721
        %767 = vmatprep.subr.mxu0 0.0
        %768 = vmatpush1.msra.mxu0 %v720
        %769 = vmatprep.subr.mxu0 0.0
        %770 = vmatpush2.msra.mxu0 0.0
        %771 = vmatprep.subr.mxu0 0.0
        %772 = vmatpush2.msra.mxu0 0.0
        %773 = vmatprep.subr.mxu0 0.0
        %774 = vmatpush2.msra.mxu0 0.0
        %775 = vmatprep.subr.mxu0 0.0
        %776 = vmatpush2.msra.mxu0 0.0
        %777 = vmatprep.subr.mxu0 0.0
        %778 = vmatpush2.msra.mxu0 0.0
        %779 = vmatprep.subr.mxu0 0.0
        %780 = vmatpush2.msra.mxu0 0.0
        %781 = vmatprep.subr.mxu0 0.0
        %782 = vmatpush2.msra.mxu0 0.0
        %783 = vmatprep.subr.mxu0 0.0
        %784 = vmatpush2.msra.mxu0 0.0
        %785 = vmatprep.subr.mxu0 0.0
        %786 = vmatpush2.msra.mxu0 0.0
        %787 = vmatprep.subr.mxu0 0.0
        %788 = vmatpush2.msra.mxu0 0.0
        %789 = vmatprep.subr.mxu0 0.0
        %790 = vmatpush2.msra.mxu0 0.0
        %791 = vmatprep.subr.mxu0 0.0
        %792 = vmatpush2.msra.mxu0 0.0
        %793 = vmatprep.subr.mxu0 0.0
        %794 = vmatpush2.msra.mxu0 0.0
        %795 = vmatprep.subr.mxu0 0.0
        %796 = vmatpush2.msra.mxu0 0.0
        %797 = vmatprep.subr.mxu0 0.0
        %798 = vmatpush2.msra.mxu0 0.0
        %799 = vmatprep.subr.mxu0 0.0
        %800 = vmatpush2.msra.mxu0 0.0
        %801 = vmatprep.mubr.f32.mxu0 0.0
        %802 = vmatmul.mubr.f32.gmra.mxu0 %v732
        %v803 = vpop.f32.mrf.mxu0
        %v804 = vadd.f32 %v729, %v803
        %v805 = vpop.f32.mrf.mxu0
        %806 = vmatprep.mubr.f32.mxu0 0.0
        %807 = vmatmul.mubr.f32.gmra.mxu0 %v735
        %v808 = vpop.f32.mrf.mxu0
        %v809 = vadd.f32 %v729, %v808
        %v810 = vpop.f32.mrf.mxu0
        %811 = vdwg.mxu0
        %v812 = vsub.f32 0.0, %v804
        %v813 = vsub.f32 0.0, %v809
        %v814 = vmul.f32 %v812, 1.442695
        %v815 = vpow.pop %v814
        %v816 = vmul.f32 %v813, 1.442695
        %v817 = vpow.pop %v816
        %v818 = vadd.f32 %v815, 1.0
        %v819 = vadd.f32 %v817, 1.0
        %v820 = vrcp.pop %v818
        %v821 = vmul.f32 1.0, %v820
        %v822 = vrcp.pop %v819
        %v823 = vmul.f32 1.0, %v822
        %v824 = vld [vmem:[%s7] sm:$0xff]
        %v827 = vcombine.high %v821, %v821
        %v829 = vunpack.c.l.s4 1966171168
        %v830 = vunpack.c.0.s8 %v829
        %v831 = vlaneseq
        %v832 = vshrl.u32 %v831, 7
        %v833 = vsub.s32 %v830, %v832
        %v834 = vrot.slane %v821, %v833
        %v836 = vunpack.c.l.s4 1966171168
        %v837 = vunpack.c.0.s8 %v836
        %v838 = vlaneseq
        %v839 = vshrl.u32 %v838, 7
        %v840 = vsub.s32 %v837, %v839
        %v841 = vrot.slane %v827, %v840
        %v842 = vcombine.high %v834, %v834
        %v843 = vcombine.high %v841, %v841
        %v845 = vunpack.c.l.s4 1966171168
        %v846 = vunpack.c.0.s8 %v845
        %v847 = vlaneseq
        %v848 = vshrl.u32 %v847, 7
        %v849 = vsub.s32 %v846, %v848
        %v850 = vrot.slane %v834, %v849
        %v852 = vunpack.c.l.s4 1966171168
        %v853 = vunpack.c.0.s8 %v852
        %v854 = vlaneseq
        %v855 = vshrl.u32 %v854, 7
        %v856 = vsub.s32 %v853, %v855
        %v857 = vrot.slane %v841, %v856
        %v859 = vunpack.c.l.s4 1966171168
        %v860 = vunpack.c.0.s8 %v859
        %v861 = vlaneseq
        %v862 = vshrl.u32 %v861, 7
        %v863 = vsub.s32 %v860, %v862
        %v864 = vrot.slane %v842, %v863
        %v866 = vunpack.c.l.s4 1966171168
        %v867 = vunpack.c.0.s8 %v866
        %v868 = vlaneseq
        %v869 = vshrl.u32 %v868, 7
        %v870 = vsub.s32 %v867, %v869
        %v871 = vrot.slane %v843, %v870
        %v872 = vcombine.high %v850, %v850
        %v873 = vcombine.high %v857, %v857
        %v874 = vcombine.high %v864, %v864
        %v875 = vcombine.high %v871, %v871
        %v876 = vcombine.high %v823, %v823
        %v878 = vunpack.c.l.s4 1966171168
        %v879 = vunpack.c.0.s8 %v878
        %v880 = vlaneseq
        %v881 = vshrl.u32 %v880, 7
        %v882 = vsub.s32 %v879, %v881
        %v883 = vrot.slane %v823, %v882
        %v885 = vunpack.c.l.s4 1966171168
        %v886 = vunpack.c.0.s8 %v885
        %v887 = vlaneseq
        %v888 = vshrl.u32 %v887, 7
        %v889 = vsub.s32 %v886, %v888
        %v890 = vrot.slane %v876, %v889
        %v891 = vcombine.high %v883, %v883
        %v892 = vcombine.high %v890, %v890
        %v894 = vunpack.c.l.s4 1966171168
        %v895 = vunpack.c.0.s8 %v894
        %v896 = vlaneseq
        %v897 = vshrl.u32 %v896, 7
        %v898 = vsub.s32 %v895, %v897
        %v899 = vrot.slane %v883, %v898
        %v901 = vunpack.c.l.s4 1966171168
        %v902 = vunpack.c.0.s8 %v901
        %v903 = vlaneseq
        %v904 = vshrl.u32 %v903, 7
        %v905 = vsub.s32 %v902, %v904
        %v906 = vrot.slane %v890, %v905
        %v908 = vunpack.c.l.s4 1966171168
        %v909 = vunpack.c.0.s8 %v908
        %v910 = vlaneseq
        %v911 = vshrl.u32 %v910, 7
        %v912 = vsub.s32 %v909, %v911
        %v913 = vrot.slane %v891, %v912
        %v915 = vunpack.c.l.s4 1966171168
        %v916 = vunpack.c.0.s8 %v915
        %v917 = vlaneseq
        %v918 = vshrl.u32 %v917, 7
        %v919 = vsub.s32 %v916, %v918
        %v920 = vrot.slane %v892, %v919
        %v921 = vcombine.high %v899, %v899
        %v922 = vcombine.high %v906, %v906
        %v923 = vcombine.high %v913, %v913
        %v924 = vcombine.high %v920, %v920
        %v925 = vlaneseq
        %v926 = vshrl.u32 %v925, 7
        %v927 = vsub.s32 0, %v926
        %v928 = vrot.slane %v850, %v927
        %v929 = vlaneseq
        %v930 = vshrl.u32 %v929, 7
        %v931 = vsub.s32 0, %v930
        %v932 = vrot.slane %v864, %v931
        %v933 = vlaneseq
        %v934 = vshrl.u32 %v933, 7
        %v935 = vsub.s32 0, %v934
        %v936 = vrot.slane %v872, %v935
        %v937 = vlaneseq
        %v938 = vshrl.u32 %v937, 7
        %v939 = vsub.s32 0, %v938
        %v940 = vrot.slane %v874, %v939
        %v941 = vlaneseq
        %v942 = vshrl.u32 %v941, 7
        %v943 = vsub.s32 0, %v942
        %v944 = vrot.slane %v857, %v943
        %v945 = vlaneseq
        %v946 = vshrl.u32 %v945, 7
        %v947 = vsub.s32 0, %v946
        %v948 = vrot.slane %v871, %v947
        %v949 = vlaneseq
        %v950 = vshrl.u32 %v949, 7
        %v951 = vsub.s32 0, %v950
        %v952 = vrot.slane %v873, %v951
        %v953 = vlaneseq
        %v954 = vshrl.u32 %v953, 7
        %v955 = vsub.s32 0, %v954
        %v956 = vrot.slane %v875, %v955
        %v957 = vlaneseq
        %v958 = vshrl.u32 %v957, 7
        %v959 = vsub.s32 0, %v958
        %v960 = vrot.slane %v899, %v959
        %v961 = vlaneseq
        %v962 = vshrl.u32 %v961, 7
        %v963 = vsub.s32 0, %v962
        %v964 = vrot.slane %v913, %v963
        %v965 = vlaneseq
        %v966 = vshrl.u32 %v965, 7
        %v967 = vsub.s32 0, %v966
        %v968 = vrot.slane %v921, %v967
        %v969 = vlaneseq
        %v970 = vshrl.u32 %v969, 7
        %v971 = vsub.s32 0, %v970
        %v972 = vrot.slane %v923, %v971
        %v973 = vlaneseq
        %v974 = vshrl.u32 %v973, 7
        %v975 = vsub.s32 0, %v974
        %v976 = vrot.slane %v906, %v975
        %v977 = vlaneseq
        %v978 = vshrl.u32 %v977, 7
        %v979 = vsub.s32 0, %v978
        %v980 = vrot.slane %v920, %v979
        %v981 = vlaneseq
        %v982 = vshrl.u32 %v981, 7
        %v983 = vsub.s32 0, %v982
        %v984 = vrot.slane %v922, %v983
        %v985 = vlaneseq
        %v986 = vshrl.u32 %v985, 7
        %v987 = vsub.s32 0, %v986
        %v988 = vrot.slane %v924, %v987
        %1006 = vrot.lane.b32.xlu0 %v824, 16
        %v1007 = vpop.permute.xlu0 %1006
        %v1009 = vmul.f32 %v928, %v1007
        %v1010 = vmul.f32 %v932, %v1007
        %v1011 = vmul.f32 %v936, %v1007
        %v1012 = vmul.f32 %v940, %v1007
        %v1013 = vmul.f32 %v944, %v1007
        %v1014 = vmul.f32 %v948, %v1007
        %v1015 = vmul.f32 %v952, %v1007
        %v1016 = vmul.f32 %v956, %v1007
        %v1017 = vmul.f32 %v960, %v1007
        %v1018 = vmul.f32 %v964, %v1007
        %v1019 = vmul.f32 %v968, %v1007
        %v1020 = vmul.f32 %v972, %v1007
        %v1021 = vmul.f32 %v976, %v1007
        %v1022 = vmul.f32 %v980, %v1007
        %v1023 = vmul.f32 %v984, %v1007
        %v1024 = vmul.f32 %v988, %v1007
        %v1025 = vmul.f32 %v1009, 1.442695
        %v1026 = vpow.pop %v1025
        %v1027 = vmul.f32 %v1010, 1.442695
        %v1028 = vpow.pop %v1027
        %v1029 = vmul.f32 %v1011, 1.442695
        %v1030 = vpow.pop %v1029
        %v1031 = vmul.f32 %v1012, 1.442695
        %v1032 = vpow.pop %v1031
        %v1033 = vmul.f32 %v1013, 1.442695
        %v1034 = vpow.pop %v1033
        %v1035 = vmul.f32 %v1014, 1.442695
        %v1036 = vpow.pop %v1035
        %v1037 = vmul.f32 %v1015, 1.442695
        %v1038 = vpow.pop %v1037
        %v1039 = vmul.f32 %v1016, 1.442695
        %v1040 = vpow.pop %v1039
        %v1041 = vmul.f32 %v1017, 1.442695
        %v1042 = vpow.pop %v1041
        %v1043 = vmul.f32 %v1018, 1.442695
        %v1044 = vpow.pop %v1043
        %v1045 = vmul.f32 %v1019, 1.442695
        %v1046 = vpow.pop %v1045
        %v1047 = vmul.f32 %v1020, 1.442695
        %v1048 = vpow.pop %v1047
        %v1049 = vmul.f32 %v1021, 1.442695
        %v1050 = vpow.pop %v1049
        %v1051 = vmul.f32 %v1022, 1.442695
        %v1052 = vpow.pop %v1051
        %v1053 = vmul.f32 %v1023, 1.442695
        %v1054 = vpow.pop %v1053
        %v1055 = vmul.f32 %v1024, 1.442695
        %v1056 = vpow.pop %v1055
        %v1057 = vlaneseq
        %v1058 = vshrl.u32 %v1057, 7
        %v1059 = vsub.s32 0, %v1058
        %v1060 = vrot.slane %v804, %v1059
        %1062 = vbcast.lane.b32.xlu0 %v1060, 256
        %v1063 = vpop.permute.xlu0 %1062
        %v1064 = vlaneseq
        %v1065 = vshrl.u32 %v1064, 7
        %v1066 = vsub.s32 1, %v1065
        %v1067 = vrot.slane %v804, %v1066
        %1069 = vbcast.lane.b32.xlu0 %v1067, 256
        %v1070 = vpop.permute.xlu0 %1069
        %v1071 = vlaneseq
        %v1072 = vshrl.u32 %v1071, 7
        %v1073 = vsub.s32 2, %v1072
        %v1074 = vrot.slane %v804, %v1073
        %1076 = vbcast.lane.b32.xlu0 %v1074, 256
        %v1077 = vpop.permute.xlu0 %1076
        %v1078 = vlaneseq
        %v1079 = vshrl.u32 %v1078, 7
        %v1080 = vsub.s32 3, %v1079
        %v1081 = vrot.slane %v804, %v1080
        %1083 = vbcast.lane.b32.xlu0 %v1081, 256
        %v1084 = vpop.permute.xlu0 %1083
        %v1085 = vlaneseq
        %v1086 = vshrl.u32 %v1085, 7
        %v1087 = vsub.s32 4, %v1086
        %v1088 = vrot.slane %v804, %v1087
        %1090 = vbcast.lane.b32.xlu0 %v1088, 256
        %v1091 = vpop.permute.xlu0 %1090
        %v1092 = vlaneseq
        %v1093 = vshrl.u32 %v1092, 7
        %v1094 = vsub.s32 5, %v1093
        %v1095 = vrot.slane %v804, %v1094
        %1097 = vbcast.lane.b32.xlu0 %v1095, 256
        %v1098 = vpop.permute.xlu0 %1097
        %v1099 = vlaneseq
        %v1100 = vshrl.u32 %v1099, 7
        %v1101 = vsub.s32 6, %v1100
        %v1102 = vrot.slane %v804, %v1101
        %1104 = vbcast.lane.b32.xlu0 %v1102, 256
        %v1105 = vpop.permute.xlu0 %1104
        %v1106 = vlaneseq
        %v1107 = vshrl.u32 %v1106, 7
        %v1108 = vsub.s32 7, %v1107
        %v1109 = vrot.slane %v804, %v1108
        %1111 = vbcast.lane.b32.xlu0 %v1109, 256
        %v1112 = vpop.permute.xlu0 %1111
        %v1113 = vlaneseq
        %v1114 = vshrl.u32 %v1113, 7
        %v1115 = vsub.s32 0, %v1114
        %v1116 = vrot.slane %v809, %v1115
        %1118 = vbcast.lane.b32.xlu0 %v1116, 256
        %v1119 = vpop.permute.xlu0 %1118
        %v1120 = vlaneseq
        %v1121 = vshrl.u32 %v1120, 7
        %v1122 = vsub.s32 1, %v1121
        %v1123 = vrot.slane %v809, %v1122
        %1125 = vbcast.lane.b32.xlu0 %v1123, 256
        %v1126 = vpop.permute.xlu0 %1125
        %v1127 = vlaneseq
        %v1128 = vshrl.u32 %v1127, 7
        %v1129 = vsub.s32 2, %v1128
        %v1130 = vrot.slane %v809, %v1129
        %1132 = vbcast.lane.b32.xlu0 %v1130, 256
        %v1133 = vpop.permute.xlu0 %1132
        %v1134 = vlaneseq
        %v1135 = vshrl.u32 %v1134, 7
        %v1136 = vsub.s32 3, %v1135
        %v1137 = vrot.slane %v809, %v1136
        %1139 = vbcast.lane.b32.xlu0 %v1137, 256
        %v1140 = vpop.permute.xlu0 %1139
        %v1141 = vlaneseq
        %v1142 = vshrl.u32 %v1141, 7
        %v1143 = vsub.s32 4, %v1142
        %v1144 = vrot.slane %v809, %v1143
        %1146 = vbcast.lane.b32.xlu0 %v1144, 256
        %v1147 = vpop.permute.xlu0 %1146
        %v1148 = vlaneseq
        %v1149 = vshrl.u32 %v1148, 7
        %v1150 = vsub.s32 5, %v1149
        %v1151 = vrot.slane %v809, %v1150
        %1153 = vbcast.lane.b32.xlu0 %v1151, 256
        %v1154 = vpop.permute.xlu0 %1153
        %v1155 = vlaneseq
        %v1156 = vshrl.u32 %v1155, 7
        %v1157 = vsub.s32 6, %v1156
        %v1158 = vrot.slane %v809, %v1157
        %1160 = vbcast.lane.b32.xlu0 %v1158, 256
        %v1161 = vpop.permute.xlu0 %1160
        %v1162 = vlaneseq
        %v1163 = vshrl.u32 %v1162, 7
        %v1164 = vsub.s32 7, %v1163
        %v1165 = vrot.slane %v809, %v1164
        %1167 = vbcast.lane.b32.xlu0 %v1165, 256
        %v1168 = vpop.permute.xlu0 %1167
        %v1169 = vcombine.high %v718, %v718
        %v1171 = vunpack.c.l.s4 1966171168
        %v1172 = vunpack.c.0.s8 %v1171
        %v1173 = vlaneseq
        %v1174 = vshrl.u32 %v1173, 7
        %v1175 = vsub.s32 %v1172, %v1174
        %v1176 = vrot.slane %v718, %v1175
        %v1178 = vunpack.c.l.s4 1966171168
        %v1179 = vunpack.c.0.s8 %v1178
        %v1180 = vlaneseq
        %v1181 = vshrl.u32 %v1180, 7
        %v1182 = vsub.s32 %v1179, %v1181
        %v1183 = vrot.slane %v1169, %v1182
        %v1184 = vcombine.high %v1176, %v1176
        %v1185 = vcombine.high %v1183, %v1183
        %v1187 = vunpack.c.l.s4 1966171168
        %v1188 = vunpack.c.0.s8 %v1187
        %v1189 = vlaneseq
        %v1190 = vshrl.u32 %v1189, 7
        %v1191 = vsub.s32 %v1188, %v1190
        %v1192 = vrot.slane %v1176, %v1191
        %v1194 = vunpack.c.l.s4 1966171168
        %v1195 = vunpack.c.0.s8 %v1194
        %v1196 = vlaneseq
        %v1197 = vshrl.u32 %v1196, 7
        %v1198 = vsub.s32 %v1195, %v1197
        %v1199 = vrot.slane %v1183, %v1198
        %v1201 = vunpack.c.l.s4 1966171168
        %v1202 = vunpack.c.0.s8 %v1201
        %v1203 = vlaneseq
        %v1204 = vshrl.u32 %v1203, 7
        %v1205 = vsub.s32 %v1202, %v1204
        %v1206 = vrot.slane %v1184, %v1205
        %v1208 = vunpack.c.l.s4 1966171168
        %v1209 = vunpack.c.0.s8 %v1208
        %v1210 = vlaneseq
        %v1211 = vshrl.u32 %v1210, 7
        %v1212 = vsub.s32 %v1209, %v1211
        %v1213 = vrot.slane %v1185, %v1212
        %v1214 = vcombine.high %v1192, %v1192
        %v1215 = vcombine.high %v1199, %v1199
        %v1216 = vcombine.high %v1206, %v1206
        %v1217 = vcombine.high %v1213, %v1213
        %v1218 = vcombine.high %v719, %v719
        %v1220 = vunpack.c.l.s4 1966171168
        %v1221 = vunpack.c.0.s8 %v1220
        %v1222 = vlaneseq
        %v1223 = vshrl.u32 %v1222, 7
        %v1224 = vsub.s32 %v1221, %v1223
        %v1225 = vrot.slane %v719, %v1224
        %v1227 = vunpack.c.l.s4 1966171168
        %v1228 = vunpack.c.0.s8 %v1227
        %v1229 = vlaneseq
        %v1230 = vshrl.u32 %v1229, 7
        %v1231 = vsub.s32 %v1228, %v1230
        %v1232 = vrot.slane %v1218, %v1231
        %v1233 = vcombine.high %v1225, %v1225
        %v1234 = vcombine.high %v1232, %v1232
        %v1236 = vunpack.c.l.s4 1966171168
        %v1237 = vunpack.c.0.s8 %v1236
        %v1238 = vlaneseq
        %v1239 = vshrl.u32 %v1238, 7
        %v1240 = vsub.s32 %v1237, %v1239
        %v1241 = vrot.slane %v1225, %v1240
        %v1243 = vunpack.c.l.s4 1966171168
        %v1244 = vunpack.c.0.s8 %v1243
        %v1245 = vlaneseq
        %v1246 = vshrl.u32 %v1245, 7
        %v1247 = vsub.s32 %v1244, %v1246
        %v1248 = vrot.slane %v1232, %v1247
        %v1250 = vunpack.c.l.s4 1966171168
        %v1251 = vunpack.c.0.s8 %v1250
        %v1252 = vlaneseq
        %v1253 = vshrl.u32 %v1252, 7
        %v1254 = vsub.s32 %v1251, %v1253
        %v1255 = vrot.slane %v1233, %v1254
        %v1257 = vunpack.c.l.s4 1966171168
        %v1258 = vunpack.c.0.s8 %v1257
        %v1259 = vlaneseq
        %v1260 = vshrl.u32 %v1259, 7
        %v1261 = vsub.s32 %v1258, %v1260
        %v1262 = vrot.slane %v1234, %v1261
        %v1263 = vcombine.high %v1241, %v1241
        %v1264 = vcombine.high %v1248, %v1248
        %v1265 = vcombine.high %v1255, %v1255
        %v1266 = vcombine.high %v1262, %v1262
        %v1267 = vlaneseq
        %v1268 = vshrl.u32 %v1267, 7
        %v1269 = vsub.s32 0, %v1268
        %v1270 = vrot.slane %v1192, %v1269
        %v1271 = vlaneseq
        %v1272 = vshrl.u32 %v1271, 7
        %v1273 = vsub.s32 0, %v1272
        %v1274 = vrot.slane %v1206, %v1273
        %v1275 = vlaneseq
        %v1276 = vshrl.u32 %v1275, 7
        %v1277 = vsub.s32 0, %v1276
        %v1278 = vrot.slane %v1214, %v1277
        %v1279 = vlaneseq
        %v1280 = vshrl.u32 %v1279, 7
        %v1281 = vsub.s32 0, %v1280
        %v1282 = vrot.slane %v1216, %v1281
        %v1283 = vlaneseq
        %v1284 = vshrl.u32 %v1283, 7
        %v1285 = vsub.s32 0, %v1284
        %v1286 = vrot.slane %v1199, %v1285
        %v1287 = vlaneseq
        %v1288 = vshrl.u32 %v1287, 7
        %v1289 = vsub.s32 0, %v1288
        %v1290 = vrot.slane %v1213, %v1289
        %v1291 = vlaneseq
        %v1292 = vshrl.u32 %v1291, 7
        %v1293 = vsub.s32 0, %v1292
        %v1294 = vrot.slane %v1215, %v1293
        %v1295 = vlaneseq
        %v1296 = vshrl.u32 %v1295, 7
        %v1297 = vsub.s32 0, %v1296
        %v1298 = vrot.slane %v1217, %v1297
        %v1299 = vlaneseq
        %v1300 = vshrl.u32 %v1299, 7
        %v1301 = vsub.s32 0, %v1300
        %v1302 = vrot.slane %v1241, %v1301
        %v1303 = vlaneseq
        %v1304 = vshrl.u32 %v1303, 7
        %v1305 = vsub.s32 0, %v1304
        %v1306 = vrot.slane %v1255, %v1305
        %v1307 = vlaneseq
        %v1308 = vshrl.u32 %v1307, 7
        %v1309 = vsub.s32 0, %v1308
        %v1310 = vrot.slane %v1263, %v1309
        %v1311 = vlaneseq
        %v1312 = vshrl.u32 %v1311, 7
        %v1313 = vsub.s32 0, %v1312
        %v1314 = vrot.slane %v1265, %v1313
        %v1315 = vlaneseq
        %v1316 = vshrl.u32 %v1315, 7
        %v1317 = vsub.s32 0, %v1316
        %v1318 = vrot.slane %v1248, %v1317
        %v1319 = vlaneseq
        %v1320 = vshrl.u32 %v1319, 7
        %v1321 = vsub.s32 0, %v1320
        %v1322 = vrot.slane %v1262, %v1321
        %v1323 = vlaneseq
        %v1324 = vshrl.u32 %v1323, 7
        %v1325 = vsub.s32 0, %v1324
        %v1326 = vrot.slane %v1264, %v1325
        %v1327 = vlaneseq
        %v1328 = vshrl.u32 %v1327, 7
        %v1329 = vsub.s32 0, %v1328
        %v1330 = vrot.slane %v1266, %v1329
        %v1347 = vmul.f32 %v1063, %v1270
        %v1348 = vmul.f32 %v1070, %v1274
        %v1349 = vmul.f32 %v1077, %v1278
        %v1350 = vmul.f32 %v1084, %v1282
        %v1351 = vmul.f32 %v1091, %v1286
        %v1352 = vmul.f32 %v1098, %v1290
        %v1353 = vmul.f32 %v1105, %v1294
        %v1354 = vmul.f32 %v1112, %v1298
        %v1355 = vmul.f32 %v1119, %v1302
        %v1356 = vmul.f32 %v1126, %v1306
        %v1357 = vmul.f32 %v1133, %v1310
        %v1358 = vmul.f32 %v1140, %v1314
        %v1359 = vmul.f32 %v1147, %v1318
        %v1360 = vmul.f32 %v1154, %v1322
        %v1361 = vmul.f32 %v1161, %v1326
        %v1362 = vmul.f32 %v1168, %v1330
        %v1363 = vmul.f32 %v1026, %v1026
        %v1364 = vmul.f32 %v1028, %v1028
        %v1365 = vmul.f32 %v1030, %v1030
        %v1366 = vmul.f32 %v1032, %v1032
        %v1367 = vmul.f32 %v1034, %v1034
        %v1368 = vmul.f32 %v1036, %v1036
        %v1369 = vmul.f32 %v1038, %v1038
        %v1370 = vmul.f32 %v1040, %v1040
        %v1371 = vmul.f32 %v1042, %v1042
        %v1372 = vmul.f32 %v1044, %v1044
        %v1373 = vmul.f32 %v1046, %v1046
        %v1374 = vmul.f32 %v1048, %v1048
        %v1375 = vmul.f32 %v1050, %v1050
        %v1376 = vmul.f32 %v1052, %v1052
        %v1377 = vmul.f32 %v1054, %v1054
        %v1378 = vmul.f32 %v1056, %v1056
        %v1379 = vsub.f32 1.0, %v1363
        %v1380 = vsub.f32 1.0, %v1364
        %v1381 = vsub.f32 1.0, %v1365
        %v1382 = vsub.f32 1.0, %v1366
        %v1383 = vsub.f32 1.0, %v1367
        %v1384 = vsub.f32 1.0, %v1368
        %v1385 = vsub.f32 1.0, %v1369
        %v1386 = vsub.f32 1.0, %v1370
        %v1387 = vsub.f32 1.0, %v1371
        %v1388 = vsub.f32 1.0, %v1372
        %v1389 = vsub.f32 1.0, %v1373
        %v1390 = vsub.f32 1.0, %v1374
        %v1391 = vsub.f32 1.0, %v1375
        %v1392 = vsub.f32 1.0, %v1376
        %v1393 = vsub.f32 1.0, %v1377
        %v1394 = vsub.f32 1.0, %v1378
        %v1395 = vadd.f32 %v1379, 1e-06
        %v1396 = vadd.f32 %v1380, 1e-06
        %v1397 = vadd.f32 %v1381, 1e-06
        %v1398 = vadd.f32 %v1382, 1e-06
        %v1399 = vadd.f32 %v1383, 1e-06
        %v1400 = vadd.f32 %v1384, 1e-06
        %v1401 = vadd.f32 %v1385, 1e-06
        %v1402 = vadd.f32 %v1386, 1e-06
        %v1403 = vadd.f32 %v1387, 1e-06
        %v1404 = vadd.f32 %v1388, 1e-06
        %v1405 = vadd.f32 %v1389, 1e-06
        %v1406 = vadd.f32 %v1390, 1e-06
        %v1407 = vadd.f32 %v1391, 1e-06
        %v1408 = vadd.f32 %v1392, 1e-06
        %v1409 = vadd.f32 %v1393, 1e-06
        %v1410 = vadd.f32 %v1394, 1e-06
        %v1411 = vrsqrt.pop %v1395
        %v1412 = vmul.f32 %v1395, %v1411
        %vm1413 = vcmp.eq.f32.partialorder %v1395, inf
        %v1414 = vsel %vm1413, %v1395, %v1412
        %vm1415 = vcmp.eq.f32.partialorder %v1395, 0.0
        %v1416 = vand.u32 %v1395, 2147483648
        %v1417 = vsel %vm1415, %v1416, %v1414
        %v1418 = vrsqrt.pop %v1396
        %v1419 = vmul.f32 %v1396, %v1418
        %vm1420 = vcmp.eq.f32.partialorder %v1396, inf
        %v1421 = vsel %vm1420, %v1396, %v1419
        %vm1422 = vcmp.eq.f32.partialorder %v1396, 0.0
        %v1423 = vand.u32 %v1396, 2147483648
        %v1424 = vsel %vm1422, %v1423, %v1421
        %v1425 = vrsqrt.pop %v1397
        %v1426 = vmul.f32 %v1397, %v1425
        %vm1427 = vcmp.eq.f32.partialorder %v1397, inf
        %v1428 = vsel %vm1427, %v1397, %v1426
        %vm1429 = vcmp.eq.f32.partialorder %v1397, 0.0
        %v1430 = vand.u32 %v1397, 2147483648
        %v1431 = vsel %vm1429, %v1430, %v1428
        %v1432 = vrsqrt.pop %v1398
        %v1433 = vmul.f32 %v1398, %v1432
        %vm1434 = vcmp.eq.f32.partialorder %v1398, inf
        %v1435 = vsel %vm1434, %v1398, %v1433
        %vm1436 = vcmp.eq.f32.partialorder %v1398, 0.0
        %v1437 = vand.u32 %v1398, 2147483648
        %v1438 = vsel %vm1436, %v1437, %v1435
        %v1439 = vrsqrt.pop %v1399
        %v1440 = vmul.f32 %v1399, %v1439
        %vm1441 = vcmp.eq.f32.partialorder %v1399, inf
        %v1442 = vsel %vm1441, %v1399, %v1440
        %vm1443 = vcmp.eq.f32.partialorder %v1399, 0.0
        %v1444 = vand.u32 %v1399, 2147483648
        %v1445 = vsel %vm1443, %v1444, %v1442
        %v1446 = vrsqrt.pop %v1400
        %v1447 = vmul.f32 %v1400, %v1446
        %vm1448 = vcmp.eq.f32.partialorder %v1400, inf
        %v1449 = vsel %vm1448, %v1400, %v1447
        %vm1450 = vcmp.eq.f32.partialorder %v1400, 0.0
        %v1451 = vand.u32 %v1400, 2147483648
        %v1452 = vsel %vm1450, %v1451, %v1449
        %v1453 = vrsqrt.pop %v1401
        %v1454 = vmul.f32 %v1401, %v1453
        %vm1455 = vcmp.eq.f32.partialorder %v1401, inf
        %v1456 = vsel %vm1455, %v1401, %v1454
        %vm1457 = vcmp.eq.f32.partialorder %v1401, 0.0
        %v1458 = vand.u32 %v1401, 2147483648
        %v1459 = vsel %vm1457, %v1458, %v1456
        %v1460 = vrsqrt.pop %v1402
        %v1461 = vmul.f32 %v1402, %v1460
        %vm1462 = vcmp.eq.f32.partialorder %v1402, inf
        %v1463 = vsel %vm1462, %v1402, %v1461
        %vm1464 = vcmp.eq.f32.partialorder %v1402, 0.0
        %v1465 = vand.u32 %v1402, 2147483648
        %v1466 = vsel %vm1464, %v1465, %v1463
        %v1467 = vrsqrt.pop %v1403
        %v1468 = vmul.f32 %v1403, %v1467
        %vm1469 = vcmp.eq.f32.partialorder %v1403, inf
        %v1470 = vsel %vm1469, %v1403, %v1468
        %vm1471 = vcmp.eq.f32.partialorder %v1403, 0.0
        %v1472 = vand.u32 %v1403, 2147483648
        %v1473 = vsel %vm1471, %v1472, %v1470
        %v1474 = vrsqrt.pop %v1404
        %v1475 = vmul.f32 %v1404, %v1474
        %vm1476 = vcmp.eq.f32.partialorder %v1404, inf
        %v1477 = vsel %vm1476, %v1404, %v1475
        %vm1478 = vcmp.eq.f32.partialorder %v1404, 0.0
        %v1479 = vand.u32 %v1404, 2147483648
        %v1480 = vsel %vm1478, %v1479, %v1477
        %v1481 = vrsqrt.pop %v1405
        %v1482 = vmul.f32 %v1405, %v1481
        %vm1483 = vcmp.eq.f32.partialorder %v1405, inf
        %v1484 = vsel %vm1483, %v1405, %v1482
        %vm1485 = vcmp.eq.f32.partialorder %v1405, 0.0
        %v1486 = vand.u32 %v1405, 2147483648
        %v1487 = vsel %vm1485, %v1486, %v1484
        %v1488 = vrsqrt.pop %v1406
        %v1489 = vmul.f32 %v1406, %v1488
        %vm1490 = vcmp.eq.f32.partialorder %v1406, inf
        %v1491 = vsel %vm1490, %v1406, %v1489
        %vm1492 = vcmp.eq.f32.partialorder %v1406, 0.0
        %v1493 = vand.u32 %v1406, 2147483648
        %v1494 = vsel %vm1492, %v1493, %v1491
        %v1495 = vrsqrt.pop %v1407
        %v1496 = vmul.f32 %v1407, %v1495
        %vm1497 = vcmp.eq.f32.partialorder %v1407, inf
        %v1498 = vsel %vm1497, %v1407, %v1496
        %vm1499 = vcmp.eq.f32.partialorder %v1407, 0.0
        %v1500 = vand.u32 %v1407, 2147483648
        %v1501 = vsel %vm1499, %v1500, %v1498
        %v1502 = vrsqrt.pop %v1408
        %v1503 = vmul.f32 %v1408, %v1502
        %vm1504 = vcmp.eq.f32.partialorder %v1408, inf
        %v1505 = vsel %vm1504, %v1408, %v1503
        %vm1506 = vcmp.eq.f32.partialorder %v1408, 0.0
        %v1507 = vand.u32 %v1408, 2147483648
        %v1508 = vsel %vm1506, %v1507, %v1505
        %v1509 = vrsqrt.pop %v1409
        %v1510 = vmul.f32 %v1409, %v1509
        %vm1511 = vcmp.eq.f32.partialorder %v1409, inf
        %v1512 = vsel %vm1511, %v1409, %v1510
        %vm1513 = vcmp.eq.f32.partialorder %v1409, 0.0
        %v1514 = vand.u32 %v1409, 2147483648
        %v1515 = vsel %vm1513, %v1514, %v1512
        %v1516 = vrsqrt.pop %v1410
        %v1517 = vmul.f32 %v1410, %v1516
        %vm1518 = vcmp.eq.f32.partialorder %v1410, inf
        %v1519 = vsel %vm1518, %v1410, %v1517
        %vm1520 = vcmp.eq.f32.partialorder %v1410, 0.0
        %v1521 = vand.u32 %v1410, 2147483648
        %v1522 = vsel %vm1520, %v1521, %v1519
        %1539 = vrot.lane.b32.xlu0 %v1347, 16
        %v1540 = vpop.permute.xlu0 %1539
        %1541 = vrot.lane.b32.xlu0 %v1348, 16
        %v1542 = vpop.permute.xlu0 %1541
        %1543 = vrot.lane.b32.xlu0 %v1349, 16
        %v1544 = vpop.permute.xlu0 %1543
        %1545 = vrot.lane.b32.xlu0 %v1350, 16
        %v1546 = vpop.permute.xlu0 %1545
        %1547 = vrot.lane.b32.xlu0 %v1351, 16
        %v1548 = vpop.permute.xlu0 %1547
        %1549 = vrot.lane.b32.xlu0 %v1352, 16
        %v1550 = vpop.permute.xlu0 %1549
        %1551 = vrot.lane.b32.xlu0 %v1353, 16
        %v1552 = vpop.permute.xlu0 %1551
        %1553 = vrot.lane.b32.xlu0 %v1354, 16
        %v1554 = vpop.permute.xlu0 %1553
        %1555 = vrot.lane.b32.xlu0 %v1355, 16
        %v1556 = vpop.permute.xlu0 %1555
        %1557 = vrot.lane.b32.xlu0 %v1356, 16
        %v1558 = vpop.permute.xlu0 %1557
        %1559 = vrot.lane.b32.xlu0 %v1357, 16
        %v1560 = vpop.permute.xlu0 %1559
        %1561 = vrot.lane.b32.xlu0 %v1358, 16
        %v1562 = vpop.permute.xlu0 %1561
        %1563 = vrot.lane.b32.xlu0 %v1359, 16
        %v1564 = vpop.permute.xlu0 %1563
        %1565 = vrot.lane.b32.xlu0 %v1360, 16
        %v1566 = vpop.permute.xlu0 %1565
        %1567 = vrot.lane.b32.xlu0 %v1361, 16
        %v1568 = vpop.permute.xlu0 %1567
        %1569 = vrot.lane.b32.xlu0 %v1362, 16
        %v1570 = vpop.permute.xlu0 %1569
        %v1587 = vmul.f32 %v1417, %v1540
        %v1588 = vmul.f32 %v1424, %v1542
        %v1589 = vmul.f32 %v1431, %v1544
        %v1590 = vmul.f32 %v1438, %v1546
        %v1591 = vmul.f32 %v1445, %v1548
        %v1592 = vmul.f32 %v1452, %v1550
        %v1593 = vmul.f32 %v1459, %v1552
        %v1594 = vmul.f32 %v1466, %v1554
        %v1595 = vmul.f32 %v1473, %v1556
        %v1596 = vmul.f32 %v1480, %v1558
        %v1597 = vmul.f32 %v1487, %v1560
        %v1598 = vmul.f32 %v1494, %v1562
        %v1599 = vmul.f32 %v1501, %v1564
        %v1600 = vmul.f32 %v1508, %v1566
        %v1601 = vmul.f32 %v1515, %v1568
        %v1602 = vmul.f32 %v1522, %v1570
        %s1604 = sor.u32 256, 8
        %1605 = vbcast.lane.b32.xlu0 %v1060, %s1604
        %v1606 = vpop.permute.xlu0 %1605
        %s1608 = sor.u32 256, 8
        %1609 = vbcast.lane.b32.xlu0 %v1067, %s1608
        %v1610 = vpop.permute.xlu0 %1609
        %s1612 = sor.u32 256, 8
        %1613 = vbcast.lane.b32.xlu0 %v1074, %s1612
        %v1614 = vpop.permute.xlu0 %1613
        %s1616 = sor.u32 256, 8
        %1617 = vbcast.lane.b32.xlu0 %v1081, %s1616
        %v1618 = vpop.permute.xlu0 %1617
        %s1620 = sor.u32 256, 8
        %1621 = vbcast.lane.b32.xlu0 %v1088, %s1620
        %v1622 = vpop.permute.xlu0 %1621
        %s1624 = sor.u32 256, 8
        %1625 = vbcast.lane.b32.xlu0 %v1095, %s1624
        %v1626 = vpop.permute.xlu0 %1625
        %s1628 = sor.u32 256, 8
        %1629 = vbcast.lane.b32.xlu0 %v1102, %s1628
        %v1630 = vpop.permute.xlu0 %1629
        %s1632 = sor.u32 256, 8
        %1633 = vbcast.lane.b32.xlu0 %v1109, %s1632
        %v1634 = vpop.permute.xlu0 %1633
        %s1636 = sor.u32 256, 8
        %1637 = vbcast.lane.b32.xlu0 %v1116, %s1636
        %v1638 = vpop.permute.xlu0 %1637
        %s1640 = sor.u32 256, 8
        %1641 = vbcast.lane.b32.xlu0 %v1123, %s1640
        %v1642 = vpop.permute.xlu0 %1641
        %s1644 = sor.u32 256, 8
        %1645 = vbcast.lane.b32.xlu0 %v1130, %s1644
        %v1646 = vpop.permute.xlu0 %1645
        %s1648 = sor.u32 256, 8
        %1649 = vbcast.lane.b32.xlu0 %v1137, %s1648
        %v1650 = vpop.permute.xlu0 %1649
        %s1652 = sor.u32 256, 8
        %1653 = vbcast.lane.b32.xlu0 %v1144, %s1652
        %v1654 = vpop.permute.xlu0 %1653
        %s1656 = sor.u32 256, 8
        %1657 = vbcast.lane.b32.xlu0 %v1151, %s1656
        %v1658 = vpop.permute.xlu0 %1657
        %s1660 = sor.u32 256, 8
        %1661 = vbcast.lane.b32.xlu0 %v1158, %s1660
        %v1662 = vpop.permute.xlu0 %1661
        %s1664 = sor.u32 256, 8
        %1665 = vbcast.lane.b32.xlu0 %v1165, %s1664
        %v1666 = vpop.permute.xlu0 %1665
        %v1667 = vld [vmem:[#allocation2] sm:$0xff]
        %1669 = vrot.lane.b32.xlu0 %v1667, 16
        %v1670 = vpop.permute.xlu0 %1669
        %v1672 = vmul.f32 %v1026, %v1670
        %v1673 = vadd.f32 %v1672, %v1587
        %v1674 = vmul.f32 %v1606, %v1673
        %vm1675 = vcmask 392320
        %v1676 = vsel %vm1675, %v1674, 0.0
        %v1677 = vrot.slane %v1676, 4
        %v1678 = vadd.f32 %v1676, %v1677
        %v1679 = vrot.slane %v1678, 2
        %v1680 = vadd.f32 %v1678, %v1679
        %v1681 = vrot.slane %v1680, 1
        %v1682 = vadd.f32 %v1680, %v1681
        %v1683 = vmul.f32 %v1028, %v1673
        %v1684 = vadd.f32 %v1683, %v1588
        %v1685 = vmul.f32 %v1610, %v1684
        %v1686 = vsel %vm1675, %v1685, 0.0
        %v1687 = vrot.slane %v1686, 4
        %v1688 = vadd.f32 %v1686, %v1687
        %v1689 = vrot.slane %v1688, 2
        %v1690 = vadd.f32 %v1688, %v1689
        %v1691 = vrot.slane %v1690, 1
        %v1692 = vadd.f32 %v1690, %v1691
        %v1693 = vmul.f32 %v1030, %v1684
        %v1694 = vadd.f32 %v1693, %v1589
        %v1695 = vmul.f32 %v1614, %v1694
        %v1696 = vsel %vm1675, %v1695, 0.0
        %v1697 = vrot.slane %v1696, 4
        %v1698 = vadd.f32 %v1696, %v1697
        %v1699 = vrot.slane %v1698, 2
        %v1700 = vadd.f32 %v1698, %v1699
        %v1701 = vrot.slane %v1700, 1
        %v1702 = vadd.f32 %v1700, %v1701
        %v1703 = vmul.f32 %v1032, %v1694
        %v1704 = vadd.f32 %v1703, %v1590
        %v1705 = vmul.f32 %v1618, %v1704
        %v1706 = vsel %vm1675, %v1705, 0.0
        %v1707 = vrot.slane %v1706, 4
        %v1708 = vadd.f32 %v1706, %v1707
        %v1709 = vrot.slane %v1708, 2
        %v1710 = vadd.f32 %v1708, %v1709
        %v1711 = vrot.slane %v1710, 1
        %v1712 = vadd.f32 %v1710, %v1711
        %v1713 = vmul.f32 %v1034, %v1704
        %v1714 = vadd.f32 %v1713, %v1591
        %v1715 = vmul.f32 %v1622, %v1714
        %v1716 = vsel %vm1675, %v1715, 0.0
        %v1717 = vrot.slane %v1716, 4
        %v1718 = vadd.f32 %v1716, %v1717
        %v1719 = vrot.slane %v1718, 2
        %v1720 = vadd.f32 %v1718, %v1719
        %v1721 = vrot.slane %v1720, 1
        %v1722 = vadd.f32 %v1720, %v1721
        %v1723 = vmul.f32 %v1036, %v1714
        %v1724 = vadd.f32 %v1723, %v1592
        %v1725 = vmul.f32 %v1626, %v1724
        %v1726 = vsel %vm1675, %v1725, 0.0
        %v1727 = vrot.slane %v1726, 4
        %v1728 = vadd.f32 %v1726, %v1727
        %v1729 = vrot.slane %v1728, 2
        %v1730 = vadd.f32 %v1728, %v1729
        %v1731 = vrot.slane %v1730, 1
        %v1732 = vadd.f32 %v1730, %v1731
        %v1733 = vmul.f32 %v1038, %v1724
        %v1734 = vadd.f32 %v1733, %v1593
        %v1735 = vmul.f32 %v1630, %v1734
        %v1736 = vsel %vm1675, %v1735, 0.0
        %v1737 = vrot.slane %v1736, 4
        %v1738 = vadd.f32 %v1736, %v1737
        %v1739 = vrot.slane %v1738, 2
        %v1740 = vadd.f32 %v1738, %v1739
        %v1741 = vrot.slane %v1740, 1
        %v1742 = vadd.f32 %v1740, %v1741
        %v1743 = vmul.f32 %v1040, %v1734
        %v1744 = vadd.f32 %v1743, %v1594
        %v1745 = vmul.f32 %v1634, %v1744
        %v1746 = vsel %vm1675, %v1745, 0.0
        %v1747 = vrot.slane %v1746, 4
        %v1748 = vadd.f32 %v1746, %v1747
        %v1749 = vrot.slane %v1748, 2
        %v1750 = vadd.f32 %v1748, %v1749
        %v1751 = vrot.slane %v1750, 1
        %v1752 = vadd.f32 %v1750, %v1751
        %v1753 = vmul.f32 %v1042, %v1744
        %v1754 = vadd.f32 %v1753, %v1595
        %v1755 = vmul.f32 %v1638, %v1754
        %v1756 = vsel %vm1675, %v1755, 0.0
        %v1757 = vrot.slane %v1756, 4
        %v1758 = vadd.f32 %v1756, %v1757
        %v1759 = vrot.slane %v1758, 2
        %v1760 = vadd.f32 %v1758, %v1759
        %v1761 = vrot.slane %v1760, 1
        %v1762 = vadd.f32 %v1760, %v1761
        %v1763 = vmul.f32 %v1044, %v1754
        %v1764 = vadd.f32 %v1763, %v1596
        %v1765 = vmul.f32 %v1642, %v1764
        %v1766 = vsel %vm1675, %v1765, 0.0
        %v1767 = vrot.slane %v1766, 4
        %v1768 = vadd.f32 %v1766, %v1767
        %v1769 = vrot.slane %v1768, 2
        %v1770 = vadd.f32 %v1768, %v1769
        %v1771 = vrot.slane %v1770, 1
        %v1772 = vadd.f32 %v1770, %v1771
        %v1773 = vmul.f32 %v1046, %v1764
        %v1774 = vadd.f32 %v1773, %v1597
        %v1775 = vmul.f32 %v1646, %v1774
        %v1776 = vsel %vm1675, %v1775, 0.0
        %v1777 = vrot.slane %v1776, 4
        %v1778 = vadd.f32 %v1776, %v1777
        %v1779 = vrot.slane %v1778, 2
        %v1780 = vadd.f32 %v1778, %v1779
        %v1781 = vrot.slane %v1780, 1
        %v1782 = vadd.f32 %v1780, %v1781
        %v1783 = vmul.f32 %v1048, %v1774
        %v1784 = vadd.f32 %v1783, %v1598
        %v1785 = vmul.f32 %v1650, %v1784
        %v1786 = vsel %vm1675, %v1785, 0.0
        %v1787 = vrot.slane %v1786, 4
        %v1788 = vadd.f32 %v1786, %v1787
        %v1789 = vrot.slane %v1788, 2
        %v1790 = vadd.f32 %v1788, %v1789
        %v1791 = vrot.slane %v1790, 1
        %v1792 = vadd.f32 %v1790, %v1791
        %v1793 = vmul.f32 %v1050, %v1784
        %v1794 = vadd.f32 %v1793, %v1599
        %v1795 = vmul.f32 %v1654, %v1794
        %v1796 = vsel %vm1675, %v1795, 0.0
        %v1797 = vrot.slane %v1796, 4
        %v1798 = vadd.f32 %v1796, %v1797
        %v1799 = vrot.slane %v1798, 2
        %v1800 = vadd.f32 %v1798, %v1799
        %v1801 = vrot.slane %v1800, 1
        %v1802 = vadd.f32 %v1800, %v1801
        %v1803 = vmul.f32 %v1052, %v1794
        %v1804 = vadd.f32 %v1803, %v1600
        %v1805 = vmul.f32 %v1658, %v1804
        %v1806 = vsel %vm1675, %v1805, 0.0
        %v1807 = vrot.slane %v1806, 4
        %v1808 = vadd.f32 %v1806, %v1807
        %v1809 = vrot.slane %v1808, 2
        %v1810 = vadd.f32 %v1808, %v1809
        %v1811 = vrot.slane %v1810, 1
        %v1812 = vadd.f32 %v1810, %v1811
        %v1813 = vmul.f32 %v1054, %v1804
        %v1814 = vadd.f32 %v1813, %v1601
        %v1815 = vmul.f32 %v1662, %v1814
        %v1816 = vsel %vm1675, %v1815, 0.0
        %v1817 = vrot.slane %v1816, 4
        %v1818 = vadd.f32 %v1816, %v1817
        %v1819 = vrot.slane %v1818, 2
        %v1820 = vadd.f32 %v1818, %v1819
        %v1821 = vrot.slane %v1820, 1
        %v1822 = vadd.f32 %v1820, %v1821
        %v1823 = vmul.f32 %v1056, %v1814
        %v1824 = vadd.f32 %v1823, %v1602
        %v1825 = vmul.f32 %v1666, %v1824
        %v1826 = vsel %vm1675, %v1825, 0.0
        %v1827 = vrot.slane %v1826, 4
        %v1828 = vadd.f32 %v1826, %v1827
        %v1829 = vrot.slane %v1828, 2
        %v1830 = vadd.f32 %v1828, %v1829
        %v1831 = vrot.slane %v1830, 1
        %v1832 = vadd.f32 %v1830, %v1831
        %1834 = vrot.lane.b32.xlu0 %v1824, 112
        %v1835 = vpop.permute.xlu0 %1834
        %1837 = vst.msk [vmem:[#allocation2] sm:$0xff] %vm510, %v1835
        %vm1838 = vcmask 1040384
        %v1839 = vsel %vm1838, %v1682, %v1692
        %vm1840 = vcmask 1041408
        %v1841 = vsel %vm1840, %v1839, %v1702
        %v1842 = vsel %vm620, %v1841, %v1712
        %vm1843 = vcmask 1043456
        %v1844 = vsel %vm1843, %v1842, %v1722
        %v1845 = vsel %vm696, %v1844, %v1732
        %v1846 = vsel %vm675, %v1845, %v1742
        %v1847 = vsel %vm654, %v1846, %v1752
        %v1848 = vsel %vm1838, %v1762, %v1772
        %v1849 = vsel %vm1840, %v1848, %v1782
        %v1850 = vsel %vm620, %v1849, %v1792
        %v1851 = vsel %vm1843, %v1850, %v1802
        %v1852 = vsel %vm696, %v1851, %v1812
        %v1853 = vsel %vm675, %v1852, %v1822
        %v1854 = vsel %vm654, %v1853, %v1832
        %v1855 = vmul.f32 %v609, 0.5
        %v1856 = vmul.f32 %v614, 0.5
        %v1857 = vmul.f32 %v609, 0.044715
        %v1858 = vmul.f32 %v614, 0.044715
        %v1859 = vmul.f32 %v1857, %v609
        %v1860 = vmul.f32 %v1858, %v614
        %v1861 = vmul.f32 %v1859, %v609
        %v1862 = vmul.f32 %v1860, %v614
        %v1863 = vadd.f32 %v609, %v1861
        %v1864 = vadd.f32 %v614, %v1862
        %v1865 = vmul.f32 %v1863, 0.7978846
        %v1866 = vmul.f32 %v1864, 0.7978846
        %v1867 = vtanh.pop %v1865
        %v1868 = vtanh.pop %v1866
        %v1869 = vadd.f32 %v1867, 1.0
        %v1870 = vadd.f32 %v1868, 1.0
        %v1871 = vmul.f32 %v1855, %v1869
        %v1872 = vmul.f32 %v1856, %v1870
        %1875 = vrot.lane.b32.xlu0 %v1847, 112
        %v1876 = vpop.permute.xlu0 %1875
        %1877 = vrot.lane.b32.xlu0 %v1854, 112
        %v1878 = vpop.permute.xlu0 %1877
        %v1881 = vmul.f32 %v1871, %v1876
        %v1882 = vmul.f32 %v1872, %v1878
        %v1883 = vld [vmem:[#allocation9] sm:$0xff]
        %v1884 = vld [vmem:[#allocation9 + $0x8] sm:$0xff]
        %v1885 = vld [vmem:[#allocation9 + $0x10] sm:$0xff]
        %v1886 = vld [vmem:[#allocation9 + $0x18] sm:$0xff]
        %v1888 = vsel %vm510, %v1881, 0
        %v1891 = vsel %vm510, %v1882, 0
        %1893 = vmatprep.subr.mxu0 0.0
        %1894 = vmatpush1.msra.mxu0 0.0
        %1895 = vmatprep.subr.mxu0 0.0
        %1896 = vmatpush1.msra.mxu0 0.0
        %1897 = vmatprep.subr.mxu0 0.0
        %1898 = vmatpush1.msra.mxu0 0.0
        %1899 = vmatprep.subr.mxu0 0.0
        %1900 = vmatpush1.msra.mxu0 0.0
        %1901 = vmatprep.subr.mxu0 0.0
        %1902 = vmatpush1.msra.mxu0 0.0
        %1903 = vmatprep.subr.mxu0 0.0
        %1904 = vmatpush1.msra.mxu0 0.0
        %1905 = vmatprep.subr.mxu0 0.0
        %1906 = vmatpush1.msra.mxu0 0.0
        %1907 = vmatprep.subr.mxu0 0.0
        %1908 = vmatpush1.msra.mxu0 0.0
        %1909 = vmatprep.subr.mxu0 0.0
        %1910 = vmatpush1.msra.mxu0 0.0
        %1911 = vmatprep.subr.mxu0 0.0
        %1912 = vmatpush1.msra.mxu0 0.0
        %1913 = vmatprep.subr.mxu0 0.0
        %1914 = vmatpush1.msra.mxu0 0.0
        %1915 = vmatprep.subr.mxu0 0.0
        %1916 = vmatpush1.msra.mxu0 0.0
        %1917 = vmatprep.subr.mxu0 0.0
        %1918 = vmatpush1.msra.mxu0 %v1886
        %1919 = vmatprep.subr.mxu0 0.0
        %1920 = vmatpush1.msra.mxu0 %v1885
        %1921 = vmatprep.subr.mxu0 0.0
        %1922 = vmatpush1.msra.mxu0 %v1884
        %1923 = vmatprep.subr.mxu0 0.0
        %1924 = vmatpush1.msra.mxu0 %v1883
        %1925 = vmatprep.subr.mxu0 0.0
        %1926 = vmatpush2.msra.mxu0 0.0
        %1927 = vmatprep.subr.mxu0 0.0
        %1928 = vmatpush2.msra.mxu0 0.0
        %1929 = vmatprep.subr.mxu0 0.0
        %1930 = vmatpush2.msra.mxu0 0.0
        %1931 = vmatprep.subr.mxu0 0.0
        %1932 = vmatpush2.msra.mxu0 0.0
        %1933 = vmatprep.subr.mxu0 0.0
        %1934 = vmatpush2.msra.mxu0 0.0
        %1935 = vmatprep.subr.mxu0 0.0
        %1936 = vmatpush2.msra.mxu0 0.0
        %1937 = vmatprep.subr.mxu0 0.0
        %1938 = vmatpush2.msra.mxu0 0.0
        %1939 = vmatprep.subr.mxu0 0.0
        %1940 = vmatpush2.msra.mxu0 0.0
        %1941 = vmatprep.subr.mxu0 0.0
        %1942 = vmatpush2.msra.mxu0 0.0
        %1943 = vmatprep.subr.mxu0 0.0
        %1944 = vmatpush2.msra.mxu0 0.0
        %1945 = vmatprep.subr.mxu0 0.0
        %1946 = vmatpush2.msra.mxu0 0.0
        %1947 = vmatprep.subr.mxu0 0.0
        %1948 = vmatpush2.msra.mxu0 0.0
        %1949 = vmatprep.subr.mxu0 0.0
        %1950 = vmatpush2.msra.mxu0 0.0
        %1951 = vmatprep.subr.mxu0 0.0
        %1952 = vmatpush2.msra.mxu0 0.0
        %1953 = vmatprep.subr.mxu0 0.0
        %1954 = vmatpush2.msra.mxu0 0.0
        %1955 = vmatprep.subr.mxu0 0.0
        %1956 = vmatpush2.msra.mxu0 0.0
        %1957 = vmatprep.mubr.f32.mxu0 0.0
        %1958 = vmatmul.mubr.f32.gmra.mxu0 %v1888
        %v1959 = vpop.f32.mrf.mxu0
        %v1960 = vadd.f32 0.0, %v1959
        %v1961 = vpop.f32.mrf.mxu0
        %1962 = vmatprep.mubr.f32.mxu0 0.0
        %1963 = vmatmul.mubr.f32.gmra.mxu0 %v1891
        %v1964 = vpop.f32.mrf.mxu0
        %v1965 = vadd.f32 0.0, %v1964
        %v1966 = vpop.f32.mrf.mxu0
        %1967 = vdwg.mxu0
        %v1968 = vadd.f32 %v506, %v1960
        %v1969 = vadd.f32 %v507, %v1965
        %v1970 = vmul.f32 %v1968, %v1968
        %v1971 = vmul.f32 %v1969, %v1969
        %v1972 = vsel %vm510, %v1970, 0.0
        %1973 = vadd.xlane.f32.xlu0 %v1972
        %v1974 = vpop.xlane.xlu0 %1973
        %v1975 = vsel %vm510, %v1971, 0.0
        %1976 = vadd.xlane.f32.xlu0 %v1975
        %v1977 = vpop.xlane.xlu0 %1976
        %v1978 = vadd.f32 %v1974, 1e-12
        %v1979 = vadd.f32 %v1977, 1e-12
        %v1980 = vrsqrt.pop %v1978
        %v1981 = vrsqrt.pop %v1979
        %v1982 = vmul.f32 %v1968, %v1980
        %v1983 = vmul.f32 %v1969, %v1981
        %v1984 = vld [vmem:[%s9] sm:$0x1]
        %v1986 = vlaneseq
        %v1987 = vshrl.u32 %v1986, 7
        %v1988 = vsub.s32 0, %v1987
        %v1989 = vrot.slane %v1984, %v1988
        %v1991 = vmul.f32 %v1982, %v1989
        %v1992 = vmul.f32 %v1983, %v1989
        %v1993 = vld [vmem:[#allocation10] sm:$0xff]
        %v1994 = vld [vmem:[#allocation10 + $0x8] sm:$0xff]
        %v1995 = vld [vmem:[#allocation10 + $0x10] sm:$0xff]
        %v1996 = vld [vmem:[#allocation10 + $0x18] sm:$0xff]
        %v1998 = vsel %vm510, %v1991, 0
        %v2001 = vsel %vm510, %v1992, 0
        %2003 = vmatprep.subr.mxu0 0.0
        %2004 = vmatpush1.msra.mxu0 0.0
        %2005 = vmatprep.subr.mxu0 0.0
        %2006 = vmatpush1.msra.mxu0 0.0
        %2007 = vmatprep.subr.mxu0 0.0
        %2008 = vmatpush1.msra.mxu0 0.0
        %2009 = vmatprep.subr.mxu0 0.0
        %2010 = vmatpush1.msra.mxu0 0.0
        %2011 = vmatprep.subr.mxu0 0.0
        %2012 = vmatpush1.msra.mxu0 0.0
        %2013 = vmatprep.subr.mxu0 0.0
        %2014 = vmatpush1.msra.mxu0 0.0
        %2015 = vmatprep.subr.mxu0 0.0
        %2016 = vmatpush1.msra.mxu0 0.0
        %2017 = vmatprep.subr.mxu0 0.0
        %2018 = vmatpush1.msra.mxu0 0.0
        %2019 = vmatprep.subr.mxu0 0.0
        %2020 = vmatpush1.msra.mxu0 0.0
        %2021 = vmatprep.subr.mxu0 0.0
        %2022 = vmatpush1.msra.mxu0 0.0
        %2023 = vmatprep.subr.mxu0 0.0
        %2024 = vmatpush1.msra.mxu0 0.0
        %2025 = vmatprep.subr.mxu0 0.0
        %2026 = vmatpush1.msra.mxu0 0.0
        %2027 = vmatprep.subr.mxu0 0.0
        %2028 = vmatpush1.msra.mxu0 %v1996
        %2029 = vmatprep.subr.mxu0 0.0
        %2030 = vmatpush1.msra.mxu0 %v1995
        %2031 = vmatprep.subr.mxu0 0.0
        %2032 = vmatpush1.msra.mxu0 %v1994
        %2033 = vmatprep.subr.mxu0 0.0
        %2034 = vmatpush1.msra.mxu0 %v1993
        %2035 = vmatprep.subr.mxu0 0.0
        %2036 = vmatpush2.msra.mxu0 0.0
        %2037 = vmatprep.subr.mxu0 0.0
        %2038 = vmatpush2.msra.mxu0 0.0
        %2039 = vmatprep.subr.mxu0 0.0
        %2040 = vmatpush2.msra.mxu0 0.0
        %2041 = vmatprep.subr.mxu0 0.0
        %2042 = vmatpush2.msra.mxu0 0.0
        %2043 = vmatprep.subr.mxu0 0.0
        %2044 = vmatpush2.msra.mxu0 0.0
        %2045 = vmatprep.subr.mxu0 0.0
        %2046 = vmatpush2.msra.mxu0 0.0
        %2047 = vmatprep.subr.mxu0 0.0
        %2048 = vmatpush2.msra.mxu0 0.0
        %2049 = vmatprep.subr.mxu0 0.0
        %2050 = vmatpush2.msra.mxu0 0.0
        %2051 = vmatprep.subr.mxu0 0.0
        %2052 = vmatpush2.msra.mxu0 0.0
        %2053 = vmatprep.subr.mxu0 0.0
        %2054 = vmatpush2.msra.mxu0 0.0
        %2055 = vmatprep.subr.mxu0 0.0
        %2056 = vmatpush2.msra.mxu0 0.0
        %2057 = vmatprep.subr.mxu0 0.0
        %2058 = vmatpush2.msra.mxu0 0.0
        %2059 = vmatprep.subr.mxu0 0.0
        %2060 = vmatpush2.msra.mxu0 0.0
        %2061 = vmatprep.subr.mxu0 0.0
        %2062 = vmatpush2.msra.mxu0 0.0
        %2063 = vmatprep.subr.mxu0 0.0
        %2064 = vmatpush2.msra.mxu0 0.0
        %2065 = vmatprep.subr.mxu0 0.0
        %2066 = vmatpush2.msra.mxu0 0.0
        %2067 = vmatprep.mubr.f32.mxu0 0.0
        %2068 = vmatmul.mubr.f32.gmra.mxu0 %v1998
        %v2069 = vpop.f32.mrf.mxu0
        %v2070 = vadd.f32 0.0, %v2069
        %v2071 = vpop.f32.mrf.mxu0
        %2072 = vmatprep.mubr.f32.mxu0 0.0
        %2073 = vmatmul.mubr.f32.gmra.mxu0 %v2001
        %v2074 = vpop.f32.mrf.mxu0
        %v2075 = vadd.f32 0.0, %v2074
        %v2076 = vpop.f32.mrf.mxu0
        %2077 = vdwg.mxu0
        %v2078 = vmul.f32 %v2070, 0.5
        %v2079 = vmul.f32 %v2075, 0.5
        %v2080 = vmul.f32 %v2070, 0.044715
        %v2081 = vmul.f32 %v2075, 0.044715
        %v2082 = vmul.f32 %v2080, %v2070
        %v2083 = vmul.f32 %v2081, %v2075
        %v2084 = vmul.f32 %v2082, %v2070
        %v2085 = vmul.f32 %v2083, %v2075
        %v2086 = vadd.f32 %v2070, %v2084
        %v2087 = vadd.f32 %v2075, %v2085
        %v2088 = vmul.f32 %v2086, 0.7978846
        %v2089 = vmul.f32 %v2087, 0.7978846
        %v2090 = vtanh.pop %v2088
        %v2091 = vtanh.pop %v2089
        %v2092 = vadd.f32 %v2090, 1.0
        %v2093 = vadd.f32 %v2091, 1.0
        %v2094 = vmul.f32 %v2078, %v2092
        %v2095 = vmul.f32 %v2079, %v2093
        %2098 = vrot.lane.b32.xlu0 %v2070, 64
        %v2099 = vpop.permute.xlu0 %2098
        %2100 = vrot.lane.b32.xlu0 %v2075, 64
        %v2101 = vpop.permute.xlu0 %2100
        %v2104 = vmul.f32 %v2094, %v2099
        %v2105 = vmul.f32 %v2095, %v2101
        %v2106 = vld [vmem:[%s11] sm:$0xff]
        %v2107 = vld [vmem:[%s11 + $0x8] sm:$0xff]
        %v2108 = vld [vmem:[%s11 + $0x10] sm:$0xff]
        %v2109 = vld [vmem:[%s11 + $0x18] sm:$0xff]
        %v2110 = vld [vmem:[%s11 + $0x20] sm:$0xff]
        %v2111 = vld [vmem:[%s11 + $0x28] sm:$0xff]
        %v2112 = vld [vmem:[%s11 + $0x30] sm:$0xff]
        %v2113 = vld [vmem:[%s11 + $0x38] sm:$0xff]
        %vm2114 = vcmask 523264
        %v2116 = vsel %vm2114, %v2104, 0
        %v2119 = vsel %vm2114, %v2105, 0
        %2121 = vmatprep.subr.mxu0 0.0
        %2122 = vmatpush1.msra.mxu0 0.0
        %2123 = vmatprep.subr.mxu0 0.0
        %2124 = vmatpush1.msra.mxu0 0.0
        %2125 = vmatprep.subr.mxu0 0.0
        %2126 = vmatpush1.msra.mxu0 0.0
        %2127 = vmatprep.subr.mxu0 0.0
        %2128 = vmatpush1.msra.mxu0 0.0
        %2129 = vmatprep.subr.mxu0 0.0
        %2130 = vmatpush1.msra.mxu0 0.0
        %2131 = vmatprep.subr.mxu0 0.0
        %2132 = vmatpush1.msra.mxu0 0.0
        %2133 = vmatprep.subr.mxu0 0.0
        %2134 = vmatpush1.msra.mxu0 0.0
        %2135 = vmatprep.subr.mxu0 0.0
        %2136 = vmatpush1.msra.mxu0 0.0
        %2137 = vmatprep.subr.mxu0 0.0
        %2138 = vmatpush1.msra.mxu0 %v2113
        %2139 = vmatprep.subr.mxu0 0.0
        %2140 = vmatpush1.msra.mxu0 %v2112
        %2141 = vmatprep.subr.mxu0 0.0
        %2142 = vmatpush1.msra.mxu0 %v2111
        %2143 = vmatprep.subr.mxu0 0.0
        %2144 = vmatpush1.msra.mxu0 %v2110
        %2145 = vmatprep.subr.mxu0 0.0
        %2146 = vmatpush1.msra.mxu0 %v2109
        %2147 = vmatprep.subr.mxu0 0.0
        %2148 = vmatpush1.msra.mxu0 %v2108
        %2149 = vmatprep.subr.mxu0 0.0
        %2150 = vmatpush1.msra.mxu0 %v2107
        %2151 = vmatprep.subr.mxu0 0.0
        %2152 = vmatpush1.msra.mxu0 %v2106
        %2153 = vmatprep.subr.mxu0 0.0
        %2154 = vmatpush2.msra.mxu0 0.0
        %2155 = vmatprep.subr.mxu0 0.0
        %2156 = vmatpush2.msra.mxu0 0.0
        %2157 = vmatprep.subr.mxu0 0.0
        %2158 = vmatpush2.msra.mxu0 0.0
        %2159 = vmatprep.subr.mxu0 0.0
        %2160 = vmatpush2.msra.mxu0 0.0
        %2161 = vmatprep.subr.mxu0 0.0
        %2162 = vmatpush2.msra.mxu0 0.0
        %2163 = vmatprep.subr.mxu0 0.0
        %2164 = vmatpush2.msra.mxu0 0.0
        %2165 = vmatprep.subr.mxu0 0.0
        %2166 = vmatpush2.msra.mxu0 0.0
        %2167 = vmatprep.subr.mxu0 0.0
        %2168 = vmatpush2.msra.mxu0 0.0
        %2169 = vmatprep.subr.mxu0 0.0
        %2170 = vmatpush2.msra.mxu0 0.0
        %2171 = vmatprep.subr.mxu0 0.0
        %2172 = vmatpush2.msra.mxu0 0.0
        %2173 = vmatprep.subr.mxu0 0.0
        %2174 = vmatpush2.msra.mxu0 0.0
        %2175 = vmatprep.subr.mxu0 0.0
        %2176 = vmatpush2.msra.mxu0 0.0
        %2177 = vmatprep.subr.mxu0 0.0
        %2178 = vmatpush2.msra.mxu0 0.0
        %2179 = vmatprep.subr.mxu0 0.0
        %2180 = vmatpush2.msra.mxu0 0.0
        %2181 = vmatprep.subr.mxu0 0.0
        %2182 = vmatpush2.msra.mxu0 0.0
        %2183 = vmatprep.subr.mxu0 0.0
        %2184 = vmatpush2.msra.mxu0 0.0
        %2185 = vmatprep.mubr.f32.mxu0 0.0
        %2186 = vmatmul.mubr.f32.gmra.mxu0 %v2116
        %v2187 = vpop.f32.mrf.mxu0
        %v2188 = vadd.f32 0.0, %v2187
        %v2189 = vpop.f32.mrf.mxu0
        %2190 = vmatprep.mubr.f32.mxu0 0.0
        %2191 = vmatmul.mubr.f32.gmra.mxu0 %v2119
        %v2192 = vpop.f32.mrf.mxu0
        %v2193 = vadd.f32 0.0, %v2192
        %v2194 = vpop.f32.mrf.mxu0
        %2195 = vdwg.mxu0
        %v2196 = vadd.f32 %v1968, %v2188
        %v2197 = vadd.f32 %v1969, %v2193
        %2198 = vst.msk [vmem:[%s486] sm:$0xff] %vm510, %v2196
        %2199 = vst.msk [vmem:[%s486 + $0x8] sm:$0xff] %vm510, %v2197
        %s2200 = sand.u32 %s310, 1
        %s2201 = scalar_lea.sflag [#allocation6], %s2200
        %s2202 = sand.u32 %s310, 1
        %s2203 = smul.addr %s2202, 16
        %s2204 = scalar_lea.vmem [#allocation12], %s2203
        // Predicated region
        $region89: #{tpu_custom_call.1} parent=67 // pred_check
          %p2205 = pneg %p320
        $region90: #{tpu_custom_call.1} parent=67 // pred_check_branch
          %2207 = sbr.rel (%p2205) target = $region92
        $region91: #{tpu_custom_call.1} parent=67 // pred_region
          %s2208 = smul.u32 2, %s34
          %s2210 = ssub.s32 256, 256
          %2211 = vsyncadd %s2201, %s2210
          %s2212 = smul.addr %s33, 2
          %s2213 = sadd.s32 %s2208, %s2212
          %s2214 = smul.addr %s2213, 128
          %s2215 = scalar_lea.hbm %s12, %s2214
          %s2216 = sshll.u32 %s2204, 4
          %s2217 = int_to_ptr.vmem [resolvable:$true] %s2216
          %2222 = dma.vmem_to_hbm [thread:$0]  %s2217, 256, %s2215, %s2201, 128, 128, 8
        $region92: #{tpu_custom_call.1} parent=67 // pred_fallthru
          _
      $region68: #{tpu_custom_call.1} parent=5 // pred_fallthru
        _
      %p2223 = scmp.le.s32.totalorder 2, %s24
      // Predicated region
      $region93: #{tpu_custom_call.1} parent=5 // pred_check
        %p2224 = pneg %p2223
      $region94: #{tpu_custom_call.1} parent=5 // pred_check_branch
        %2226 = sbr.rel (%p2224) target = $region96
      $region95: #{tpu_custom_call.1} parent=5 // pred_region
        %s2227 = ssub.s32 %s24, 2
        // Predicated region
        $region97: #{tpu_custom_call.1} parent=95 // pred_check
          %p2228 = pneg %p326
        $region98: #{tpu_custom_call.1} parent=95 // pred_check_branch
          %2230 = sbr.rel (%p2228) target = $region100
        $region99: #{tpu_custom_call.1} parent=95 // pred_region
          %s2231 = sand.u32 %s311, 1
          %s2232 = scalar_lea.sflag [#allocation6], %s2231
          %s2233 = sand.u32 %s311, 1
          %s2234 = smul.addr %s2233, 16
          %s2235 = scalar_lea.vmem [#allocation12], %s2234
          %2236 = dma.done %s2232, 256
        $region100: #{tpu_custom_call.1} parent=95 // pred_fallthru
          _
      $region96: #{tpu_custom_call.1} parent=5 // pred_fallthru
        _
    $region6: #{tpu_custom_call.1} parent=1 // loop_footer
      %s28 = sadd.s32 1, %s24
    $region7: #{tpu_custom_call.1} parent=1 // loop_footer_branch
      %23 = sbr.rel target = $region3
    $region8: #{tpu_custom_call.1} parent=1 // loop_exit
      _
    %2237 = vsyncpa [#allocation5], 1
    %s2238 = scalar_lea.sflag [#allocation5], 1
    %2239 = vsyncpa %s2238, 1
    %2240 = vsyncpa [#allocation8], 1
    %2241 = vsyncpa [#allocation11], 1
    %2242 = vsyncpa [#allocation6], 1
    %s2243 = scalar_lea.sflag [#allocation6], 1
    %2244 = vsyncpa %s2243, 1

</llo_original>
